<compile_context>
chip_gen: v7x
topology: tpu7x:2x2x1
jax: 0.10.0
libtpu: 0.0.40
codegen_flags: <defaults>
</compile_context>

<pallas_src>
import functools

import jax
import jax.numpy as jnp
from jax.experimental import pallas as pl
from jax.experimental.pallas import tpu as pltpu


_NEG_LARGE = -1e30
_RESIDENT_BUDGET = 24 * 1024 * 1024     # resident-s path must fit this (v7x-safe)
_VMEM_LIMIT_CAP = 48 * 1024 * 1024      # < v7x 64 MiB physical VMEM


def _round_up(x, m):
    return ((x + m - 1) // m) * m


# ----------------------------------------------------------------------------
# Path A: whole s^T resident in VMEM, 1-D grid over im row tiles.
# ----------------------------------------------------------------------------
def _resident_kernel(im_ref, st_ref, bias_ref, *rest, max_violation, tm, np_n,
                     has_col_bias):
    if has_col_bias:
        cbias_ref, out_ref = rest
    else:
        (out_ref,) = rest
    i = pl.program_id(0)

    # scores[r, c] = <im_r, s_c>; canonical (M,K)x(K,N), f32 accumulation.
    scores = jax.lax.dot_general(
        im_ref[...], st_ref[...],
        dimension_numbers=(((1,), (0,)), ((), ())),
        preferred_element_type=jnp.float32)                # (tm, np_n)

    # bias = margin - diag (padded rows = -LARGE -> clamp to 0).
    z = scores + bias_ref[...]
    if has_col_bias:
        z = z + cbias_ref[...]                             # padded cols = -LARGE
    cost = jnp.maximum(z, 0.0)

    # Zero the true diagonal (global row/col index match).
    rg = i * tm + jax.lax.broadcasted_iota(jnp.int32, (tm, np_n), 0)
    cg = jax.lax.broadcasted_iota(jnp.int32, (tm, np_n), 1)
    cost = jnp.where(rg == cg, 0.0, cost)

    if max_violation:
        red = jnp.max(cost, axis=1, keepdims=True)
    else:
        red = jnp.sum(cost, axis=1, keepdims=True)

    # Lane-dense, unmasked (tm, 128) store: per-row partials in lane 0.
    lane = jax.lax.broadcasted_iota(jnp.int32, (tm, 128), 1)
    out_ref[...] = jnp.where(lane == 0, red, 0.0)


# ----------------------------------------------------------------------------
# Path B: streamed s^T column tiles, 2-D grid (i parallel, j reduction).
# ----------------------------------------------------------------------------
def _stream_kernel(im_ref, st_ref, bias_ref, *rest, max_violation, tm, tn,
                   has_col_bias):
    if has_col_bias:
        cbias_ref, out_ref, acc_ref = rest
    else:
        out_ref, acc_ref = rest
    i = pl.program_id(0)
    j = pl.program_id(1)

    @pl.when(j == 0)
    def _():
        acc_ref[...] = jnp.zeros_like(acc_ref)

    scores = jax.lax.dot_general(
        im_ref[...], st_ref[...],
        dimension_numbers=(((1,), (0,)), ((), ())),
        preferred_element_type=jnp.float32)                # (tm, tn)

    z = scores + bias_ref[...]
    if has_col_bias:
        z = z + cbias_ref[...]
    cost = jnp.maximum(z, 0.0)

    # Diagonal zeroing only on blocks whose row/col ranges overlap the
    # diagonal (works for rectangular tiles); other blocks skip the iota work.
    row0 = i * tm
    col0 = j * tn

    def _mask_diag(c):
        rg = row0 + jax.lax.broadcasted_iota(jnp.int32, (tm, tn), 0)
        cg = col0 + jax.lax.broadcasted_iota(jnp.int32, (tm, tn), 1)
        return jnp.where(rg == cg, 0.0, c)

    overlaps = jnp.logical_and(row0 < col0 + tn, col0 < row0 + tm)
    cost = jax.lax.cond(overlaps, _mask_diag, lambda c: c, cost)

    if max_violation:
        acc_ref[...] = jnp.maximum(acc_ref[...],
                                   jnp.max(cost, axis=1, keepdims=True))
    else:
        acc_ref[...] += jnp.sum(cost, axis=1, keepdims=True)

    @pl.when(j == pl.num_programs(1) - 1)
    def _():
        lane = jax.lax.broadcasted_iota(jnp.int32, (tm, 128), 1)
        out_ref[...] = jnp.where(lane == 0, acc_ref[...], 0.0)


# ----------------------------------------------------------------------------
# Wrapper
# ----------------------------------------------------------------------------
def contrastive_loss(im, s, *, margin=0.0, max_violation=False,
                     tm=None, tn=256, force_stream=False):
    """im: (N, D), s: (N, D) (f32 or bf16). Returns scalar f32 loss."""
    assert im.ndim == 2 and s.ndim == 2 and im.shape == s.shape
    n, d = im.shape
    bytes_el = jnp.dtype(im.dtype).itemsize
    dp = _round_up(d, 128)                       # lane-align contraction dim

    # --- path selection: keep whole s^T resident in VMEM when it fits -------
    np_n_res = _round_up(n, 128)
    est_resident = (2 * 256 * dp * bytes_el              # im tile (double buf)
                    + 2 * dp * np_n_res * bytes_el       # whole s^T (double buf)
                    + 3 * 256 * np_n_res * 4             # f32 scores/cost temps
                    + 2 * 256 * 128 * 4                  # output tile
                    + (1 << 16))
    resident = (not force_stream) and (est_resident <= _RESIDENT_BUDGET)

    if tm is None:
        # Resident: 256 keeps grid_m >= 2 for N >= 512 (v7x megacore).
        # Streamed: big tm so the s re-stream clears the HBM roofline.
        tm = 256 if resident else (512 if bytes_el >= 4 else 256)

    np_m = _round_up(n, tm)
    np_n = np_n_res if resident else _round_up(n, tn)
    grid_m = np_m // tm
    grid_n = np_n // tn
    has_col_bias = np_n != n

    # --- operands ------------------------------------------------------------
    im_p = jnp.pad(im, ((0, np_m - n), (0, dp - d)))
    s_t = jnp.pad(s, ((0, np_n - n), (0, dp - d))).T         # (dp, np_n) = (K, N)

    # Per-row bias = margin - diag(im @ s.T) (O(N*D) elementwise); padded rows
    # get -LARGE so the hinge clamps them to exactly 0.
    diag = jnp.sum(im.astype(jnp.float32) * s.astype(jnp.float32),
                   axis=-1, keepdims=True)
    bias = jnp.pad(margin - diag, ((0, np_m - n), (0, 0)),
                   constant_values=_NEG_LARGE).astype(jnp.float32)

    args = [im_p, s_t, bias]
    if resident:
        in_specs = [
            pl.BlockSpec((tm, dp), lambda i: (i, 0)),         # im row tile
            pl.BlockSpec((dp, np_n), lambda i: (0, 0)),       # whole s^T, resident
            pl.BlockSpec((tm, 1), lambda i: (i, 0)),          # per-row bias
        ]
    else:
        in_specs = [
            pl.BlockSpec((tm, dp), lambda i, j: (i, 0)),
            pl.BlockSpec((dp, tn), lambda i, j: (0, j)),      # s^T column tile
            pl.BlockSpec((tm, 1), lambda i, j: (i, 0)),
        ]

    if has_col_bias:
        # Column bias: 0 for valid columns, -LARGE for padded columns.
        cbias = jnp.where(jnp.arange(np_n)[None, :] < n,
                          0.0, _NEG_LARGE).astype(jnp.float32)
        args.append(cbias)
        if resident:
            in_specs.append(pl.BlockSpec((1, np_n), lambda i: (0, 0)))
        else:
            in_specs.append(pl.BlockSpec((1, tn), lambda i, j: (0, j)))

    out_shape = jax.ShapeDtypeStruct((np_m, 128), jnp.float32)

    if resident:
        kernel = functools.partial(
            _resident_kernel, max_violation=bool(max_violation),
            tm=tm, np_n=np_n, has_col_bias=has_col_bias)
        grid = (grid_m,)
        out_spec = pl.BlockSpec((tm, 128), lambda i: (i, 0))
        scratch = []
        dims = ("parallel",)
        est = est_resident
    else:
        kernel = functools.partial(
            _stream_kernel, max_violation=bool(max_violation),
            tm=tm, tn=tn, has_col_bias=has_col_bias)
        grid = (grid_m, grid_n)
        out_spec = pl.BlockSpec((tm, 128), lambda i, j: (i, 0))
        scratch = [pltpu.VMEM((tm, 1), jnp.float32)]
        dims = ("parallel", "arbitrary")
        est = (2 * tm * dp * bytes_el + 2 * dp * tn * bytes_el
               + 3 * tm * tn * 4 + 2 * tm * 128 * 4 + (1 << 16))

    vmem_limit = int(min(_VMEM_LIMIT_CAP,
                         max(32 * 1024 * 1024, est * 3 // 2)))

    out = pl.pallas_call(
        kernel,
        out_shape=out_shape,
        grid_spec=pltpu.PrefetchScalarGridSpec(
            num_scalar_prefetch=0,
            grid=grid,
            in_specs=in_specs,
            out_specs=out_spec,
            scratch_shapes=scratch,
        ),
        compiler_params=pltpu.CompilerParams(
            dimension_semantics=dims,
            vmem_limit_bytes=vmem_limit,
        ),
    )(*args)

    # Only lane 0 of each valid row carries data; padded rows are exact zeros.
    return jnp.sum(out)


def _reference_loss(im, s, margin=0.0, max_violation=False):
    scores = jnp.dot(im.astype(jnp.float32), s.astype(jnp.float32).T,
                     precision=jax.lax.Precision.HIGHEST)
    diag = jnp.diagonal(scores)[:, None]
    cost_s = jnp.maximum(margin + scores - diag, 0.0)
    eye = jnp.eye(scores.shape[0], dtype=bool)
    cost_s = jnp.where(eye, 0.0, cost_s)
    if max_violation:
        cost_s = cost_s.max(axis=1)
    return cost_s.sum()


if __name__ == "__main__":
    key = jax.random.PRNGKey(0)
    k_im, k_s = jax.random.split(key)
    # N=300 exercises row/col padding; D=32 exercises lane padding of K.
    N, D = 300, 32
    im = jax.random.normal(k_im, (N, D), dtype=jnp.float32)
    s = jax.random.normal(k_s, (N, D), dtype=jnp.float32)

    configs = [
        (0.0, False),   # module defaults: ContrastiveLoss(margin=0, max_violation=False)
        (0.2, False),
        (0.2, True),
    ]
    for margin, max_violation in configs:
        ref = _reference_loss(im, s, margin=margin, max_violation=max_violation)

        # Resident-s path (default at these shapes).
        loss_r = jax.block_until_ready(
            contrastive_loss(im, s, margin=margin, max_violation=max_violation))
        # Streamed fallback path, forced, with rectangular tiles to exercise
        # the global-index diagonal gate.
        loss_s = jax.block_until_ready(
            contrastive_loss(im, s, margin=margin, max_violation=max_violation,
                             force_stream=True, tm=256, tn=128))

        for loss in (loss_r, loss_s):
            assert jnp.allclose(loss, ref, rtol=5e-4, atol=5e-2), (
                margin, max_violation, float(loss), float(ref))

    print("KERNEL_OK")
</pallas_src>

<mosaic_0001>
module attributes {stable_mosaic.version = 11 : i64} {
  func.func @_resident_kernel(%arg0: i32, %arg1: memref<256x128xf32, #tpu.memory_space<vmem>>, %arg2: memref<128x384xf32, #tpu.memory_space<vmem>>, %arg3: memref<256x1xf32, #tpu.memory_space<vmem>>, %arg4: memref<1x384xf32, #tpu.memory_space<vmem>>, %arg5: memref<256x128xf32, #tpu.memory_space<vmem>>) attributes {dimension_semantics = [#tpu.dimension_semantics<parallel>], iteration_bounds = array<i64: 2>, scalar_prefetch = 0 : i64, scratch_operands = 0 : i64, tpu.core_type = #tpu.core_type<tc>, window_params = [{transform_indices = @transform_0, window_bounds = array<i64: 256, 128>}, {pipeline_mode = #tpu.pipeline_mode<synchronous>, transform_indices = @transform_1, window_bounds = array<i64: 128, 384>}, {transform_indices = @transform_2, window_bounds = array<i64: 256, 1>}, {pipeline_mode = #tpu.pipeline_mode<synchronous>, transform_indices = @transform_3, window_bounds = array<i64: 1, 384>}, {transform_indices = @transform_4, window_bounds = array<i64: 256, 128>}]} {
    %c0 = arith.constant 0 : index
    %c0_0 = arith.constant 0 : index
    %0 = vector.load %arg1[%c0, %c0_0] : memref<256x128xf32, #tpu.memory_space<vmem>>, vector<256x128xf32>
    %c0_1 = arith.constant 0 : index
    %c0_2 = arith.constant 0 : index
    %1 = vector.load %arg2[%c0_1, %c0_2] : memref<128x384xf32, #tpu.memory_space<vmem>>, vector<128x384xf32>
    %cst = arith.constant dense<0.000000e+00> : vector<256x384xf32>
    %2 = tpu.matmul %0, %1, %cst {dimension_numbers = #tpu.dot_dimension_numbers<[1], [0], [0], [1], [0, 0, 1, 1], [], []>} : vector<256x128xf32>, vector<128x384xf32>, vector<256x384xf32> -> vector<256x384xf32>
    %c0_3 = arith.constant 0 : index
    %c0_4 = arith.constant 0 : index
    %3 = vector.load %arg3[%c0_3, %c0_4] : memref<256x1xf32, #tpu.memory_space<vmem>>, vector<256x1xf32>
    %4 = vector.broadcast %3 : vector<256x1xf32> to vector<256x384xf32>
    %5 = arith.addf %2, %4 : vector<256x384xf32>
    %c0_5 = arith.constant 0 : index
    %c0_6 = arith.constant 0 : index
    %6 = vector.load %arg4[%c0_5, %c0_6] : memref<1x384xf32, #tpu.memory_space<vmem>>, vector<1x384xf32>
    %7 = vector.broadcast %6 : vector<1x384xf32> to vector<256x384xf32>
    %8 = arith.addf %5, %7 : vector<256x384xf32>
    %cst_7 = arith.constant 0.000000e+00 : f32
    %9 = vector.broadcast %cst_7 : f32 to vector<256x384xf32>
    %10 = arith.maximumf %8, %9 : vector<256x384xf32>
    %c256_i32 = arith.constant 256 : i32
    %11 = arith.muli %arg0, %c256_i32 : i32
    %12 = tpu.iota {dimensions = array<i32: 0>} : vector<256x384xi32>
    %13 = vector.broadcast %11 : i32 to vector<256x384xi32>
    %14 = arith.addi %13, %12 : vector<256x384xi32>
    %15 = tpu.iota {dimensions = array<i32: 1>} : vector<256x384xi32>
    %16 = arith.cmpi eq, %14, %15 : vector<256x384xi32>
    %cst_8 = arith.constant 0.000000e+00 : f32
    %17 = vector.broadcast %cst_8 : f32 to vector<256x384xf32>
    %18 = arith.select %16, %17, %10 : vector<256x384xi1>, vector<256x384xf32>
    %cst_9 = arith.constant dense<0.000000e+00> : vector<256xf32>
    %19 = vector.multi_reduction <add>, %18, %cst_9 [1] : vector<256x384xf32> to vector<256xf32>
    %20 = vector.shape_cast %19 : vector<256xf32> to vector<256x1xf32>
    %21 = tpu.iota {dimensions = array<i32: 1>} : vector<256x128xi32>
    %c0_i32 = arith.constant 0 : i32
    %22 = vector.broadcast %c0_i32 : i32 to vector<256x128xi32>
    %23 = arith.cmpi eq, %21, %22 : vector<256x128xi32>
    %cst_10 = arith.constant 0.000000e+00 : f32
    %24 = vector.shape_cast %20 : vector<256x1xf32> to vector<256x1xf32>
    %25 = vector.broadcast %24 : vector<256x1xf32> to vector<256x128xf32>
    %26 = vector.broadcast %cst_10 : f32 to vector<256x128xf32>
    %27 = arith.select %23, %25, %26 : vector<256x128xi1>, vector<256x128xf32>
    %c0_11 = arith.constant 0 : index
    %c0_12 = arith.constant 0 : index
    %28 = vector.load %arg5[%c0_11, %c0_12] : memref<256x128xf32, #tpu.memory_space<vmem>>, vector<256x128xf32>
    tpu.vector_store %arg5[%c0_11, %c0_12], %27 {strides = array<i32>} : memref<256x128xf32, #tpu.memory_space<vmem>>, vector<256x128xf32>,
    return
  }
  func.func @transform_0(%arg0: i32) -> (i32, i32) {
    %c0_i32 = arith.constant 0 : i32
    %c0_i32_0 = arith.constant 0 : i32
    return %arg0, %c0_i32 : i32, i32
  }
  func.func @transform_1(%arg0: i32) -> (i32, i32) {
    %c0_i32 = arith.constant 0 : i32
    %c0_i32_0 = arith.constant 0 : i32
    %c0_i32_1 = arith.constant 0 : i32
    return %c0_i32, %c0_i32_0 : i32, i32
  }
  func.func @transform_2(%arg0: i32) -> (i32, i32) {
    %c0_i32 = arith.constant 0 : i32
    %c0_i32_0 = arith.constant 0 : i32
    return %arg0, %c0_i32 : i32, i32
  }
  func.func @transform_3(%arg0: i32) -> (i32, i32) {
    %c0_i32 = arith.constant 0 : i32
    %c0_i32_0 = arith.constant 0 : i32
    %c0_i32_1 = arith.constant 0 : i32
    return %c0_i32, %c0_i32_0 : i32, i32
  }
  func.func @transform_4(%arg0: i32) -> (i32, i32) {
    %c0_i32 = arith.constant 0 : i32
    %c0_i32_0 = arith.constant 0 : i32
    return %arg0, %c0_i32 : i32, i32
  }
}

</mosaic_0001>

<llo_original>
// kernel: tpu_custom_call.1
$region0: #{tpu_custom_call.1}
  #allocation0 [shape = 'u32[]', space=smem, size = 0x4, offset = 0x4, fixed_abs, tag = 'smem constant byte address 0x4 - core index']
  #allocation1 [shape = 'u32[144,128]{1,0:T(1,128)}', space=vmem, size = 0x12000, scoped, tag = 'internal scratch']
  %s0 = inlined_call_operand.vmem [shape: f32[512,128], index: 0, kind: input, shape index: {}]
  %s1 = inlined_call_operand.hbm [shape: f32[128,384], index: 1, kind: input, shape index: {}]
  %s2 = inlined_call_operand.vmem [shape: f32[512,1], index: 2, kind: input, shape index: {}]
  %s3 = inlined_call_operand.vmem [shape: f32[1,384], index: 3, kind: input, shape index: {}]
  %s4 = inlined_call_operand.hbm [shape: f32[512,128], index: 4, kind: output, shape index: {}]
  %s5 = sld [smem:[#allocation0]]
  $region53: #{tpu_custom_call.1} parent=0
    _
  %s7 = ssub.s32 1, %s5
  %s8 = scalar_select 0, %s7, %s5
  $region1: #{tpu_custom_call.1} parent=0
    #allocation2 [shape = 'u8[196608]{0}', space=vmem, size = 0x30000, scoped, tag = 'input window, operand 1, single buffered']
    #allocation3 [shape = 's32[2]{0}', space=sflag, size = 0x8, scoped, tag = 'scoped memory for tpu_custom_call.1']
    #allocation4 [shape = 's32[2]{0}', space=sflag, size = 0x8, scoped, tag = 'scoped memory for tpu_custom_call.1']
    #allocation5 [shape = 'u8[262144]{0}', space=vmem, size = 0x40000, scoped, tag = 'output window, operand 0']
    %9 = vsyncpa [#allocation3], 0
    %10 = vsyncpa [#allocation4], 0
    %s11 = scalar_lea.sflag [#allocation4], 1
    %12 = vsyncpa %s11, 0
    loop: start=0, step=1, limit=4
    $region2: #{tpu_custom_call.1} parent=1 // loop_pre_header
      _
    $region3: #{tpu_custom_call.1} parent=1 // loop_header
      %s14 = sphi 0, %s18
      %p15 = scmp.ge.s32.totalorder %s14, 4
      %s24 = sphi 0, %s26
      %s27 = sphi 0, %s24
      %s28 = sphi 0, %s27
      %s44 = sphi 0, %s28
      %s48 = sphi 0, %s48
      %s50 = sphi 0, %s48
      %s51 = sphi 0, %s50
      %s65 = sphi 0, %s51
      %s71 = sphi 0, %s73
      %s74 = sphi 0, %s71
      %s75 = sphi 0, %s74
      %s91 = sphi 0, %s75
      %s95 = sphi 0, %s95
      %s97 = sphi 0, %s95
      %s98 = sphi 0, %s97
      %s112 = sphi 0, %s98
      %s118 = sphi 0, %s120
      %s121 = sphi 0, %s118
      %s122 = sphi 0, %s121
      %s138 = sphi 0, %s122
    $region4: #{tpu_custom_call.1} parent=1 // loop_header_branch
      %17 = sbr.rel (%p15) target = $region8
    $region5: #{tpu_custom_call.1} parent=1 // loop_body
      %s19 = ssub.s32 %s14, 1
      %s20 = ssub.s32 %s14, 2
      %s21 = sadd.s32 %s14, 1
      %s22 = ssub.s32 %s14, %s21
      %p23 = scmp.eq.s32.totalorder %s22, 0
      %s25 = sadd.s32 %s24, 1
      %s26 = scalar_select %p23, %s24, %s25
      %p29 = pneg %p23
      %p30 = scmp.eq.s32.totalorder %s14, 1
      %p31 = por %p29, %p30
      %p32 = scmp.ne.s32.totalorder %s24, %s27
      %p33 = scmp.eq.s32.totalorder %s14, 0
      %p34 = por %p32, %p33
      %p35 = scmp.ne.s32.totalorder %s24, %s27
      %p36 = scmp.eq.s32.totalorder %s19, 1
      %p37 = por %p35, %p36
      %p38 = scmp.ne.s32.totalorder %s27, %s28
      %p39 = scmp.eq.s32.totalorder %s19, 0
      %p40 = por %p38, %p39
      %p41 = scmp.ne.s32.totalorder %s27, %s28
      %p42 = scmp.eq.s32.totalorder %s20, 1
      %p43 = por %p41, %p42
      %p45 = scmp.ne.s32.totalorder %s28, %s44
      %p46 = scmp.eq.s32.totalorder %s20, 0
      %p47 = por %p45, %p46
      %s49 = sadd.s32 %s48, 1
      %p52 = scmp.eq.s32.totalorder %s14, 1
      %p53 = scmp.ne.s32.totalorder %s48, %s50
      %p54 = scmp.eq.s32.totalorder %s14, 0
      %p55 = por %p53, %p54
      %p56 = scmp.ne.s32.totalorder %s48, %s50
      %p57 = scmp.eq.s32.totalorder %s19, 1
      %p58 = por %p56, %p57
      %p59 = scmp.ne.s32.totalorder %s50, %s51
      %p60 = scmp.eq.s32.totalorder %s19, 0
      %p61 = por %p59, %p60
      %p62 = scmp.ne.s32.totalorder %s50, %s51
      %p63 = scmp.eq.s32.totalorder %s20, 1
      %p64 = por %p62, %p63
      %p66 = scmp.ne.s32.totalorder %s51, %s65
      %p67 = scmp.eq.s32.totalorder %s20, 0
      %p68 = por %p66, %p67
      %s69 = ssub.s32 %s14, %s21
      %p70 = scmp.eq.s32.totalorder %s69, 0
      %s72 = sadd.s32 %s71, 1
      %s73 = scalar_select %p70, %s71, %s72
      %p76 = pneg %p70
      %p77 = scmp.eq.s32.totalorder %s14, 1
      %p78 = por %p76, %p77
      %p79 = scmp.ne.s32.totalorder %s71, %s74
      %p80 = scmp.eq.s32.totalorder %s14, 0
      %p81 = por %p79, %p80
      %p82 = scmp.ne.s32.totalorder %s71, %s74
      %p83 = scmp.eq.s32.totalorder %s19, 1
      %p84 = por %p82, %p83
      %p85 = scmp.ne.s32.totalorder %s74, %s75
      %p86 = scmp.eq.s32.totalorder %s19, 0
      %p87 = por %p85, %p86
      %p88 = scmp.ne.s32.totalorder %s74, %s75
      %p89 = scmp.eq.s32.totalorder %s20, 1
      %p90 = por %p88, %p89
      %p92 = scmp.ne.s32.totalorder %s75, %s91
      %p93 = scmp.eq.s32.totalorder %s20, 0
      %p94 = por %p92, %p93
      %s96 = sadd.s32 %s95, 1
      %p99 = scmp.eq.s32.totalorder %s14, 1
      %p100 = scmp.ne.s32.totalorder %s95, %s97
      %p101 = scmp.eq.s32.totalorder %s14, 0
      %p102 = por %p100, %p101
      %p103 = scmp.ne.s32.totalorder %s95, %s97
      %p104 = scmp.eq.s32.totalorder %s19, 1
      %p105 = por %p103, %p104
      %p106 = scmp.ne.s32.totalorder %s97, %s98
      %p107 = scmp.eq.s32.totalorder %s19, 0
      %p108 = por %p106, %p107
      %p109 = scmp.ne.s32.totalorder %s97, %s98
      %p110 = scmp.eq.s32.totalorder %s20, 1
      %p111 = por %p109, %p110
      %p113 = scmp.ne.s32.totalorder %s98, %s112
      %p114 = scmp.eq.s32.totalorder %s20, 0
      %p115 = por %p113, %p114
      %s116 = ssub.s32 %s14, %s21
      %p117 = scmp.eq.s32.totalorder %s116, 0
      %s119 = sadd.s32 %s118, 1
      %s120 = scalar_select %p117, %s118, %s119
      %p123 = pneg %p117
      %p124 = scmp.eq.s32.totalorder %s14, 1
      %p125 = por %p123, %p124
      %p126 = scmp.ne.s32.totalorder %s118, %s121
      %p127 = scmp.eq.s32.totalorder %s14, 0
      %p128 = por %p126, %p127
      %p129 = scmp.ne.s32.totalorder %s118, %s121
      %p130 = scmp.eq.s32.totalorder %s19, 1
      %p131 = por %p129, %p130
      %p132 = scmp.ne.s32.totalorder %s121, %s122
      %p133 = scmp.eq.s32.totalorder %s19, 0
      %p134 = por %p132, %p133
      %p135 = scmp.ne.s32.totalorder %s121, %s122
      %p136 = scmp.eq.s32.totalorder %s20, 1
      %p137 = por %p135, %p136
      %p139 = scmp.ne.s32.totalorder %s122, %s138
      %p140 = scmp.eq.s32.totalorder %s20, 0
      %p141 = por %p139, %p140
      %p142 = scmp.le.s32.totalorder 1, %s14
      %p143 = scmp.lt.s32.totalorder %s14, 3
      %p144 = pnand %p142, %p143
      %p145 = pneg %p144
      // Predicated region
      $region9: #{tpu_custom_call.1} parent=5 // pred_check
        _
      $region10: #{tpu_custom_call.1} parent=5 // pred_check_branch
        %147 = sbr.rel (%p144) target = $region12
      $region11: #{tpu_custom_call.1} parent=5 // pred_region
        %s148 = ssub.s32 %s14, 1
        // Predicated region
        $region13: #{tpu_custom_call.1} parent=11 // pred_check
          %p149 = pneg %p61
        $region14: #{tpu_custom_call.1} parent=11 // pred_check_branch
          %151 = sbr.rel (%p149) target = $region16
        $region15: #{tpu_custom_call.1} parent=11 // pred_region
          %s153 = ssub.s32 6144, 6144
          %154 = vsyncadd [#allocation3], %s153
          %s155 = sshll.u32 [#allocation2], 4
          %s156 = int_to_ptr.vmem [resolvable:$true] %s155
          %161 = dma.hbm_to_vmem [thread:$0]  %s1, 6144, %s156, [#allocation3], 384, 384, 24
        $region16: #{tpu_custom_call.1} parent=11 // pred_fallthru
          _
        // Predicated region
        $region17: #{tpu_custom_call.1} parent=11 // pred_check
          %p162 = pneg %p108
        $region18: #{tpu_custom_call.1} parent=11 // pred_check_branch
          %164 = sbr.rel (%p162) target = $region20
        $region19: #{tpu_custom_call.1} parent=11 // pred_region
          _
        $region20: #{tpu_custom_call.1} parent=11 // pred_fallthru
          _
      $region12: #{tpu_custom_call.1} parent=5 // pred_fallthru
        _
      %p165 = scmp.lt.s32.totalorder %s14, 2
      // Predicated region
      $region21: #{tpu_custom_call.1} parent=5 // pred_check
        %p166 = pneg %p165
      $region22: #{tpu_custom_call.1} parent=5 // pred_check_branch
        %168 = sbr.rel (%p166) target = $region24
      $region23: #{tpu_custom_call.1} parent=5 // pred_region
        // Predicated region
        $region25: #{tpu_custom_call.1} parent=23 // pred_check
          %p169 = pneg %p34
        $region26: #{tpu_custom_call.1} parent=23 // pred_check_branch
          %171 = sbr.rel (%p169) target = $region28
        $region27: #{tpu_custom_call.1} parent=23 // pred_region
          %s172 = smul.u32 32, %s14
          %p173 = scmp.lt.s32.totalorder %s172, 63
          %s174 = scalar_select %p173, %s172, 63
          %s175 = smul.addr %s174, 8
          %s176 = scalar_lea.vmem %s0, %s175
          %s177 = smul.u32 32, %s14
        $region28: #{tpu_custom_call.1} parent=23 // pred_fallthru
          _
        // Predicated region
        $region29: #{tpu_custom_call.1} parent=23 // pred_check
          %p178 = pneg %p81
        $region30: #{tpu_custom_call.1} parent=23 // pred_check_branch
          %180 = sbr.rel (%p178) target = $region32
        $region31: #{tpu_custom_call.1} parent=23 // pred_region
          %s181 = smul.u32 32, %s14
          %p182 = scmp.lt.s32.totalorder %s181, 63
          %s183 = scalar_select %p182, %s181, 63
          %s184 = smul.addr %s183, 8
          %s185 = scalar_lea.vmem %s2, %s184
          %s186 = smul.u32 32, %s14
        $region32: #{tpu_custom_call.1} parent=23 // pred_fallthru
          _
      $region24: #{tpu_custom_call.1} parent=5 // pred_fallthru
        _
      %p187 = scmp.le.s32.totalorder 1, %s14
      %p188 = scmp.lt.s32.totalorder %s14, 3
      %p189 = pnand %p187, %p188
      %p190 = pneg %p189
      // Predicated region
      $region33: #{tpu_custom_call.1} parent=5 // pred_check
        _
      $region34: #{tpu_custom_call.1} parent=5 // pred_check_branch
        %192 = sbr.rel (%p189) target = $region36
      $region35: #{tpu_custom_call.1} parent=5 // pred_region
        %s193 = ssub.s32 %s14, 1
        // Predicated region
        $region37: #{tpu_custom_call.1} parent=35 // pred_check
          %p194 = pneg %p61
        $region38: #{tpu_custom_call.1} parent=35 // pred_check_branch
          %196 = sbr.rel (%p194) target = $region40
        $region39: #{tpu_custom_call.1} parent=35 // pred_region
          %197 = dma.done [#allocation3], 6144
        $region40: #{tpu_custom_call.1} parent=35 // pred_fallthru
          _
        %s198 = smul.u32 32, %s19
        %p199 = scmp.lt.s32.totalorder %s198, 63
        %s200 = scalar_select %p199, %s198, 63
        %s201 = smul.addr %s200, 8
        %s202 = scalar_lea.vmem %s0, %s201
        %p203 = pneg %p40
        %p204 = pneg %p37
        %p205 = pneg %p61
        %p206 = pneg %p58
        %s207 = smul.u32 32, %s19
        %p208 = scmp.lt.s32.totalorder %s207, 63
        %s209 = scalar_select %p208, %s207, 63
        %s210 = smul.addr %s209, 8
        %s211 = scalar_lea.vmem %s2, %s210
        %p212 = pneg %p87
        %p213 = pneg %p84
        %p214 = pneg %p108
        %p215 = pneg %p105
        %p216 = pneg %p134
        %p217 = pneg %p131
        %s218 = sand.u32 %s121, 1
        %s219 = scalar_lea.sflag [#allocation4], %s218
        %s220 = sand.u32 %s121, 1
        %s221 = smul.addr %s220, 256
        %s222 = scalar_lea.vmem [#allocation5], %s221
        %s223 = smul.u32 32, %s19
        %p224 = scmp.lt.s32.totalorder %s223, 63
        %s225 = scalar_select %p224, %s223, 63
        %s226 = smul.addr %s225, 8
        %s227 = scalar_lea.vmem %s0, %s226
        %s228 = smul.u32 32, %s19
        %s229 = smul.u32 32, %s19
        %p230 = scmp.lt.s32.totalorder %s229, 63
        %s231 = scalar_select %p230, %s229, 63
        %s232 = smul.addr %s231, 8
        %s233 = scalar_lea.vmem %s2, %s232
        %s234 = smul.u32 32, %s19
        %s235 = smul.u32 32, %s19
        %v236 = vld [vmem:[%s227] sm:$0xff]
        %v237 = vld [vmem:[%s227 + $0x8] sm:$0xff]
        %v238 = vld [vmem:[%s227 + $0x10] sm:$0xff]
        %v239 = vld [vmem:[%s227 + $0x18] sm:$0xff]
        %v240 = vld [vmem:[%s227 + $0x20] sm:$0xff]
        %v241 = vld [vmem:[%s227 + $0x28] sm:$0xff]
        %v242 = vld [vmem:[%s227 + $0x30] sm:$0xff]
        %v243 = vld [vmem:[%s227 + $0x38] sm:$0xff]
        %v244 = vld [vmem:[%s227 + $0x40] sm:$0xff]
        %v245 = vld [vmem:[%s227 + $0x48] sm:$0xff]
        %v246 = vld [vmem:[%s227 + $0x50] sm:$0xff]
        %v247 = vld [vmem:[%s227 + $0x58] sm:$0xff]
        %v248 = vld [vmem:[%s227 + $0x60] sm:$0xff]
        %v249 = vld [vmem:[%s227 + $0x68] sm:$0xff]
        %v250 = vld [vmem:[%s227 + $0x70] sm:$0xff]
        %v251 = vld [vmem:[%s227 + $0x78] sm:$0xff]
        %v252 = vld [vmem:[%s227 + $0x80] sm:$0xff]
        %v253 = vld [vmem:[%s227 + $0x88] sm:$0xff]
        %v254 = vld [vmem:[%s227 + $0x90] sm:$0xff]
        %v255 = vld [vmem:[%s227 + $0x98] sm:$0xff]
        %v256 = vld [vmem:[%s227 + $0xa0] sm:$0xff]
        %v257 = vld [vmem:[%s227 + $0xa8] sm:$0xff]
        %v258 = vld [vmem:[%s227 + $0xb0] sm:$0xff]
        %v259 = vld [vmem:[%s227 + $0xb8] sm:$0xff]
        %v260 = vld [vmem:[%s227 + $0xc0] sm:$0xff]
        %v261 = vld [vmem:[%s227 + $0xc8] sm:$0xff]
        %v262 = vld [vmem:[%s227 + $0xd0] sm:$0xff]
        %v263 = vld [vmem:[%s227 + $0xd8] sm:$0xff]
        %v264 = vld [vmem:[%s227 + $0xe0] sm:$0xff]
        %v265 = vld [vmem:[%s227 + $0xe8] sm:$0xff]
        %v266 = vld [vmem:[%s227 + $0xf0] sm:$0xff]
        %v267 = vld [vmem:[%s227 + $0xf8] sm:$0xff]
        %v268 = vld [vmem:[#allocation2] sm:$0xff]
        %v269 = vld [vmem:[#allocation2 + $0x8] sm:$0xff]
        %v270 = vld [vmem:[#allocation2 + $0x10] sm:$0xff]
        %v271 = vld [vmem:[#allocation2 + $0x18] sm:$0xff]
        %v272 = vld [vmem:[#allocation2 + $0x20] sm:$0xff]
        %v273 = vld [vmem:[#allocation2 + $0x28] sm:$0xff]
        %v274 = vld [vmem:[#allocation2 + $0x30] sm:$0xff]
        %v275 = vld [vmem:[#allocation2 + $0x38] sm:$0xff]
        %v276 = vld [vmem:[#allocation2 + $0x40] sm:$0xff]
        %v277 = vld [vmem:[#allocation2 + $0x48] sm:$0xff]
        %v278 = vld [vmem:[#allocation2 + $0x50] sm:$0xff]
        %v279 = vld [vmem:[#allocation2 + $0x58] sm:$0xff]
        %v280 = vld [vmem:[#allocation2 + $0x60] sm:$0xff]
        %v281 = vld [vmem:[#allocation2 + $0x68] sm:$0xff]
        %v282 = vld [vmem:[#allocation2 + $0x70] sm:$0xff]
        %v283 = vld [vmem:[#allocation2 + $0x78] sm:$0xff]
        %v284 = vld [vmem:[#allocation2 + $0x80] sm:$0xff]
        %v285 = vld [vmem:[#allocation2 + $0x88] sm:$0xff]
        %v286 = vld [vmem:[#allocation2 + $0x90] sm:$0xff]
        %v287 = vld [vmem:[#allocation2 + $0x98] sm:$0xff]
        %v288 = vld [vmem:[#allocation2 + $0xa0] sm:$0xff]
        %v289 = vld [vmem:[#allocation2 + $0xa8] sm:$0xff]
        %v290 = vld [vmem:[#allocation2 + $0xb0] sm:$0xff]
        %v291 = vld [vmem:[#allocation2 + $0xb8] sm:$0xff]
        %v292 = vld [vmem:[#allocation2 + $0xc0] sm:$0xff]
        %v293 = vld [vmem:[#allocation2 + $0xc8] sm:$0xff]
        %v294 = vld [vmem:[#allocation2 + $0xd0] sm:$0xff]
        %v295 = vld [vmem:[#allocation2 + $0xd8] sm:$0xff]
        %v296 = vld [vmem:[#allocation2 + $0xe0] sm:$0xff]
        %v297 = vld [vmem:[#allocation2 + $0xe8] sm:$0xff]
        %v298 = vld [vmem:[#allocation2 + $0xf0] sm:$0xff]
        %v299 = vld [vmem:[#allocation2 + $0xf8] sm:$0xff]
        %v300 = vld [vmem:[#allocation2 + $0x100] sm:$0xff]
        %v301 = vld [vmem:[#allocation2 + $0x108] sm:$0xff]
        %v302 = vld [vmem:[#allocation2 + $0x110] sm:$0xff]
        %v303 = vld [vmem:[#allocation2 + $0x118] sm:$0xff]
        %v304 = vld [vmem:[#allocation2 + $0x120] sm:$0xff]
        %v305 = vld [vmem:[#allocation2 + $0x128] sm:$0xff]
        %v306 = vld [vmem:[#allocation2 + $0x130] sm:$0xff]
        %v307 = vld [vmem:[#allocation2 + $0x138] sm:$0xff]
        %v308 = vld [vmem:[#allocation2 + $0x140] sm:$0xff]
        %v309 = vld [vmem:[#allocation2 + $0x148] sm:$0xff]
        %v310 = vld [vmem:[#allocation2 + $0x150] sm:$0xff]
        %v311 = vld [vmem:[#allocation2 + $0x158] sm:$0xff]
        %v312 = vld [vmem:[#allocation2 + $0x160] sm:$0xff]
        %v313 = vld [vmem:[#allocation2 + $0x168] sm:$0xff]
        %v314 = vld [vmem:[#allocation2 + $0x170] sm:$0xff]
        %v315 = vld [vmem:[#allocation2 + $0x178] sm:$0xff]
        %v316 = vld [vmem:[%s233] sm:$0xff]
        %v317 = vld [vmem:[%s233 + $0x8] sm:$0xff]
        %v318 = vld [vmem:[%s233 + $0x10] sm:$0xff]
        %v319 = vld [vmem:[%s233 + $0x18] sm:$0xff]
        %v320 = vld [vmem:[%s233 + $0x20] sm:$0xff]
        %v321 = vld [vmem:[%s233 + $0x28] sm:$0xff]
        %v322 = vld [vmem:[%s233 + $0x30] sm:$0xff]
        %v323 = vld [vmem:[%s233 + $0x38] sm:$0xff]
        %v324 = vld [vmem:[%s233 + $0x40] sm:$0xff]
        %v325 = vld [vmem:[%s233 + $0x48] sm:$0xff]
        %v326 = vld [vmem:[%s233 + $0x50] sm:$0xff]
        %v327 = vld [vmem:[%s233 + $0x58] sm:$0xff]
        %v328 = vld [vmem:[%s233 + $0x60] sm:$0xff]
        %v329 = vld [vmem:[%s233 + $0x68] sm:$0xff]
        %v330 = vld [vmem:[%s233 + $0x70] sm:$0xff]
        %v331 = vld [vmem:[%s233 + $0x78] sm:$0xff]
        %v332 = vld [vmem:[%s233 + $0x80] sm:$0xff]
        %v333 = vld [vmem:[%s233 + $0x88] sm:$0xff]
        %v334 = vld [vmem:[%s233 + $0x90] sm:$0xff]
        %v335 = vld [vmem:[%s233 + $0x98] sm:$0xff]
        %v336 = vld [vmem:[%s233 + $0xa0] sm:$0xff]
        %v337 = vld [vmem:[%s233 + $0xa8] sm:$0xff]
        %v338 = vld [vmem:[%s233 + $0xb0] sm:$0xff]
        %v339 = vld [vmem:[%s233 + $0xb8] sm:$0xff]
        %v340 = vld [vmem:[%s233 + $0xc0] sm:$0xff]
        %v341 = vld [vmem:[%s233 + $0xc8] sm:$0xff]
        %v342 = vld [vmem:[%s233 + $0xd0] sm:$0xff]
        %v343 = vld [vmem:[%s233 + $0xd8] sm:$0xff]
        %v344 = vld [vmem:[%s233 + $0xe0] sm:$0xff]
        %v345 = vld [vmem:[%s233 + $0xe8] sm:$0xff]
        %v346 = vld [vmem:[%s233 + $0xf0] sm:$0xff]
        %v347 = vld [vmem:[%s233 + $0xf8] sm:$0xff]
        %349 = vset.pattern.permute.xlu0 0
        %350 = vperm.xlu0 %349, %v316
        %v351 = vpop.permute.xlu0 %350
        %354 = vset.pattern.permute.xlu0 0
        %355 = vperm.xlu0 %354, %v317
        %v356 = vpop.permute.xlu0 %355
        %359 = vset.pattern.permute.xlu0 0
        %360 = vperm.xlu0 %359, %v318
        %v361 = vpop.permute.xlu0 %360
        %364 = vset.pattern.permute.xlu0 0
        %365 = vperm.xlu0 %364, %v319
        %v366 = vpop.permute.xlu0 %365
        %369 = vset.pattern.permute.xlu0 0
        %370 = vperm.xlu0 %369, %v320
        %v371 = vpop.permute.xlu0 %370
        %374 = vset.pattern.permute.xlu0 0
        %375 = vperm.xlu0 %374, %v321
        %v376 = vpop.permute.xlu0 %375
        %379 = vset.pattern.permute.xlu0 0
        %380 = vperm.xlu0 %379, %v322
        %v381 = vpop.permute.xlu0 %380
        %384 = vset.pattern.permute.xlu0 0
        %385 = vperm.xlu0 %384, %v323
        %v386 = vpop.permute.xlu0 %385
        %389 = vset.pattern.permute.xlu0 0
        %390 = vperm.xlu0 %389, %v324
        %v391 = vpop.permute.xlu0 %390
        %394 = vset.pattern.permute.xlu0 0
        %395 = vperm.xlu0 %394, %v325
        %v396 = vpop.permute.xlu0 %395
        %399 = vset.pattern.permute.xlu0 0
        %400 = vperm.xlu0 %399, %v326
        %v401 = vpop.permute.xlu0 %400
        %404 = vset.pattern.permute.xlu0 0
        %405 = vperm.xlu0 %404, %v327
        %v406 = vpop.permute.xlu0 %405
        %409 = vset.pattern.permute.xlu0 0
        %410 = vperm.xlu0 %409, %v328
        %v411 = vpop.permute.xlu0 %410
        %414 = vset.pattern.permute.xlu0 0
        %415 = vperm.xlu0 %414, %v329
        %v416 = vpop.permute.xlu0 %415
        %419 = vset.pattern.permute.xlu0 0
        %420 = vperm.xlu0 %419, %v330
        %v421 = vpop.permute.xlu0 %420
        %424 = vset.pattern.permute.xlu0 0
        %425 = vperm.xlu0 %424, %v331
        %v426 = vpop.permute.xlu0 %425
        %429 = vset.pattern.permute.xlu0 0
        %430 = vperm.xlu0 %429, %v332
        %v431 = vpop.permute.xlu0 %430
        %434 = vset.pattern.permute.xlu0 0
        %435 = vperm.xlu0 %434, %v333
        %v436 = vpop.permute.xlu0 %435
        %439 = vset.pattern.permute.xlu0 0
        %440 = vperm.xlu0 %439, %v334
        %v441 = vpop.permute.xlu0 %440
        %444 = vset.pattern.permute.xlu0 0
        %445 = vperm.xlu0 %444, %v335
        %v446 = vpop.permute.xlu0 %445
        %449 = vset.pattern.permute.xlu0 0
        %450 = vperm.xlu0 %449, %v336
        %v451 = vpop.permute.xlu0 %450
        %454 = vset.pattern.permute.xlu0 0
        %455 = vperm.xlu0 %454, %v337
        %v456 = vpop.permute.xlu0 %455
        %459 = vset.pattern.permute.xlu0 0
        %460 = vperm.xlu0 %459, %v338
        %v461 = vpop.permute.xlu0 %460
        %464 = vset.pattern.permute.xlu0 0
        %465 = vperm.xlu0 %464, %v339
        %v466 = vpop.permute.xlu0 %465
        %469 = vset.pattern.permute.xlu0 0
        %470 = vperm.xlu0 %469, %v340
        %v471 = vpop.permute.xlu0 %470
        %474 = vset.pattern.permute.xlu0 0
        %475 = vperm.xlu0 %474, %v341
        %v476 = vpop.permute.xlu0 %475
        %479 = vset.pattern.permute.xlu0 0
        %480 = vperm.xlu0 %479, %v342
        %v481 = vpop.permute.xlu0 %480
        %484 = vset.pattern.permute.xlu0 0
        %485 = vperm.xlu0 %484, %v343
        %v486 = vpop.permute.xlu0 %485
        %489 = vset.pattern.permute.xlu0 0
        %490 = vperm.xlu0 %489, %v344
        %v491 = vpop.permute.xlu0 %490
        %494 = vset.pattern.permute.xlu0 0
        %495 = vperm.xlu0 %494, %v345
        %v496 = vpop.permute.xlu0 %495
        %499 = vset.pattern.permute.xlu0 0
        %500 = vperm.xlu0 %499, %v346
        %v501 = vpop.permute.xlu0 %500
        %504 = vset.pattern.permute.xlu0 0
        %505 = vperm.xlu0 %504, %v347
        %v506 = vpop.permute.xlu0 %505
        %508 = vmatprep.subr.mxu0 %v269
        %509 = vmatpush1.msra.mxu0 %v268
        %510 = vmatprep.subr.mxu0 %v272
        %511 = vmatpush1.msra.mxu0 %v271
        %512 = vmatprep.subr.mxu0 %v275
        %513 = vmatpush1.msra.mxu0 %v274
        %514 = vmatprep.subr.mxu0 %v278
        %515 = vmatpush1.msra.mxu0 %v277
        %516 = vmatprep.subr.mxu0 %v281
        %517 = vmatpush1.msra.mxu0 %v280
        %518 = vmatprep.subr.mxu0 %v284
        %519 = vmatpush1.msra.mxu0 %v283
        %520 = vmatprep.subr.mxu0 %v287
        %521 = vmatpush1.msra.mxu0 %v286
        %522 = vmatprep.subr.mxu0 %v290
        %523 = vmatpush1.msra.mxu0 %v289
        %524 = vmatprep.subr.mxu0 %v293
        %525 = vmatpush1.msra.mxu0 %v292
        %526 = vmatprep.subr.mxu0 %v296
        %527 = vmatpush1.msra.mxu0 %v295
        %528 = vmatprep.subr.mxu0 %v299
        %529 = vmatpush1.msra.mxu0 %v298
        %530 = vmatprep.subr.mxu0 %v302
        %531 = vmatpush1.msra.mxu0 %v301
        %532 = vmatprep.subr.mxu0 %v305
        %533 = vmatpush1.msra.mxu0 %v304
        %534 = vmatprep.subr.mxu0 %v308
        %535 = vmatpush1.msra.mxu0 %v307
        %536 = vmatprep.subr.mxu0 %v311
        %537 = vmatpush1.msra.mxu0 %v310
        %538 = vmatprep.subr.mxu0 %v314
        %539 = vmatpush1.msra.mxu0 %v313
        %540 = vmatprep.subr.mxu0 0.0
        %541 = vmatpush1.msra.mxu0 0.0
        %542 = vmatprep.subr.mxu0 0.0
        %543 = vmatpush1.msra.mxu0 0.0
        %544 = vmatprep.subr.mxu0 0.0
        %545 = vmatpush1.msra.mxu0 0.0
        %546 = vmatprep.subr.mxu0 0.0
        %547 = vmatpush1.msra.mxu0 0.0
        %548 = vmatprep.subr.mxu0 0.0
        %549 = vmatpush1.msra.mxu0 0.0
        %550 = vmatprep.subr.mxu0 0.0
        %551 = vmatpush1.msra.mxu0 0.0
        %552 = vmatprep.subr.mxu0 0.0
        %553 = vmatpush1.msra.mxu0 0.0
        %554 = vmatprep.subr.mxu0 0.0
        %555 = vmatpush1.msra.mxu0 0.0
        %556 = vmatprep.subr.mxu0 0.0
        %557 = vmatpush1.msra.mxu0 0.0
        %558 = vmatprep.subr.mxu0 0.0
        %559 = vmatpush1.msra.mxu0 0.0
        %560 = vmatprep.subr.mxu0 0.0
        %561 = vmatpush1.msra.mxu0 0.0
        %562 = vmatprep.subr.mxu0 0.0
        %563 = vmatpush1.msra.mxu0 0.0
        %564 = vmatprep.subr.mxu0 0.0
        %565 = vmatpush1.msra.mxu0 0.0
        %566 = vmatprep.subr.mxu0 0.0
        %567 = vmatpush1.msra.mxu0 0.0
        %568 = vmatprep.subr.mxu0 0.0
        %569 = vmatpush1.msra.mxu0 0.0
        %570 = vmatprep.subr.mxu0 0.0
        %571 = vmatpush1.msra.mxu0 0.0
        %572 = vmatprep.mubr.f32.mxu0 0.0
        %573 = vmatmul.mubr.f32.gmra.mrb[0].mxu0 %v236
        %v574 = vpop.f32.mrb[0].mxu0
        %v575 = vadd.f32 %v351, %v574
        %v576 = vpop.f32.mrb[0].mxu0
        %v577 = vadd.f32 %v351, %v576
        %578 = vmatprep.mubr.f32.mxu0 0.0
        %579 = vmatmul.mubr.f32.gmra.mrb[0].mxu0 %v237
        %v580 = vpop.f32.mrb[0].mxu0
        %v581 = vadd.f32 %v356, %v580
        %v582 = vpop.f32.mrb[0].mxu0
        %v583 = vadd.f32 %v356, %v582
        %584 = vmatprep.mubr.f32.mxu0 0.0
        %585 = vmatmul.mubr.f32.gmra.mrb[0].mxu0 %v238
        %v586 = vpop.f32.mrb[0].mxu0
        %v587 = vadd.f32 %v361, %v586
        %v588 = vpop.f32.mrb[0].mxu0
        %v589 = vadd.f32 %v361, %v588
        %590 = vmatprep.mubr.f32.mxu0 0.0
        %591 = vmatmul.mubr.f32.gmra.mrb[0].mxu0 %v239
        %v592 = vpop.f32.mrb[0].mxu0
        %v593 = vadd.f32 %v366, %v592
        %v594 = vpop.f32.mrb[0].mxu0
        %v595 = vadd.f32 %v366, %v594
        %596 = vmatprep.mubr.f32.mxu0 0.0
        %597 = vmatmul.mubr.f32.gmra.mrb[0].mxu0 %v240
        %v598 = vpop.f32.mrb[0].mxu0
        %v599 = vadd.f32 %v371, %v598
        %v600 = vpop.f32.mrb[0].mxu0
        %v601 = vadd.f32 %v371, %v600
        %602 = vmatprep.mubr.f32.mxu0 0.0
        %603 = vmatmul.mubr.f32.gmra.mrb[0].mxu0 %v241
        %v604 = vpop.f32.mrb[0].mxu0
        %v605 = vadd.f32 %v376, %v604
        %v606 = vpop.f32.mrb[0].mxu0
        %v607 = vadd.f32 %v376, %v606
        %608 = vmatprep.mubr.f32.mxu0 0.0
        %609 = vmatmul.mubr.f32.gmra.mrb[0].mxu0 %v242
        %v610 = vpop.f32.mrb[0].mxu0
        %v611 = vadd.f32 %v381, %v610
        %v612 = vpop.f32.mrb[0].mxu0
        %v613 = vadd.f32 %v381, %v612
        %614 = vmatprep.mubr.f32.mxu0 0.0
        %615 = vmatmul.mubr.f32.gmra.mrb[0].mxu0 %v243
        %v616 = vpop.f32.mrb[0].mxu0
        %v617 = vadd.f32 %v386, %v616
        %v618 = vpop.f32.mrb[0].mxu0
        %v619 = vadd.f32 %v386, %v618
        %620 = vmatprep.mubr.f32.mxu0 0.0
        %621 = vmatmul.mubr.f32.gmra.mrb[0].mxu0 %v244
        %v622 = vpop.f32.mrb[0].mxu0
        %v623 = vadd.f32 %v391, %v622
        %v624 = vpop.f32.mrb[0].mxu0
        %v625 = vadd.f32 %v391, %v624
        %626 = vmatprep.mubr.f32.mxu0 0.0
        %627 = vmatmul.mubr.f32.gmra.mrb[0].mxu0 %v245
        %v628 = vpop.f32.mrb[0].mxu0
        %v629 = vadd.f32 %v396, %v628
        %v630 = vpop.f32.mrb[0].mxu0
        %v631 = vadd.f32 %v396, %v630
        %632 = vmatprep.mubr.f32.mxu0 0.0
        %633 = vmatmul.mubr.f32.gmra.mrb[0].mxu0 %v246
        %v634 = vpop.f32.mrb[0].mxu0
        %v635 = vadd.f32 %v401, %v634
        %v636 = vpop.f32.mrb[0].mxu0
        %v637 = vadd.f32 %v401, %v636
        %638 = vmatprep.mubr.f32.mxu0 0.0
        %639 = vmatmul.mubr.f32.gmra.mrb[0].mxu0 %v247
        %v640 = vpop.f32.mrb[0].mxu0
        %v641 = vadd.f32 %v406, %v640
        %v642 = vpop.f32.mrb[0].mxu0
        %v643 = vadd.f32 %v406, %v642
        %644 = vmatprep.mubr.f32.mxu0 0.0
        %645 = vmatmul.mubr.f32.gmra.mrb[0].mxu0 %v248
        %v646 = vpop.f32.mrb[0].mxu0
        %v647 = vadd.f32 %v411, %v646
        %v648 = vpop.f32.mrb[0].mxu0
        %v649 = vadd.f32 %v411, %v648
        %650 = vmatprep.mubr.f32.mxu0 0.0
        %651 = vmatmul.mubr.f32.gmra.mrb[0].mxu0 %v249
        %v652 = vpop.f32.mrb[0].mxu0
        %v653 = vadd.f32 %v416, %v652
        %v654 = vpop.f32.mrb[0].mxu0
        %v655 = vadd.f32 %v416, %v654
        %656 = vmatprep.mubr.f32.mxu0 0.0
        %657 = vmatmul.mubr.f32.gmra.mrb[0].mxu0 %v250
        %v658 = vpop.f32.mrb[0].mxu0
        %v659 = vadd.f32 %v421, %v658
        %v660 = vpop.f32.mrb[0].mxu0
        %v661 = vadd.f32 %v421, %v660
        %662 = vmatprep.mubr.f32.mxu0 0.0
        %663 = vmatmul.mubr.f32.gmra.mrb[0].mxu0 %v251
        %v664 = vpop.f32.mrb[0].mxu0
        %v665 = vadd.f32 %v426, %v664
        %v666 = vpop.f32.mrb[0].mxu0
        %v667 = vadd.f32 %v426, %v666
        %668 = vmatprep.mubr.f32.mxu0 0.0
        %669 = vmatmul.mubr.f32.gmra.mrb[0].mxu0 %v252
        %v670 = vpop.f32.mrb[0].mxu0
        %v671 = vadd.f32 %v431, %v670
        %v672 = vpop.f32.mrb[0].mxu0
        %v673 = vadd.f32 %v431, %v672
        %674 = vmatprep.mubr.f32.mxu0 0.0
        %675 = vmatmul.mubr.f32.gmra.mrb[0].mxu0 %v253
        %v676 = vpop.f32.mrb[0].mxu0
        %v677 = vadd.f32 %v436, %v676
        %v678 = vpop.f32.mrb[0].mxu0
        %v679 = vadd.f32 %v436, %v678
        %680 = vmatprep.mubr.f32.mxu0 0.0
        %681 = vmatmul.mubr.f32.gmra.mrb[0].mxu0 %v254
        %v682 = vpop.f32.mrb[0].mxu0
        %v683 = vadd.f32 %v441, %v682
        %v684 = vpop.f32.mrb[0].mxu0
        %v685 = vadd.f32 %v441, %v684
        %686 = vmatprep.mubr.f32.mxu0 0.0
        %687 = vmatmul.mubr.f32.gmra.mrb[0].mxu0 %v255
        %v688 = vpop.f32.mrb[0].mxu0
        %v689 = vadd.f32 %v446, %v688
        %v690 = vpop.f32.mrb[0].mxu0
        %v691 = vadd.f32 %v446, %v690
        %692 = vmatprep.mubr.f32.mxu0 0.0
        %693 = vmatmul.mubr.f32.gmra.mrb[0].mxu0 %v256
        %v694 = vpop.f32.mrb[0].mxu0
        %v695 = vadd.f32 %v451, %v694
        %v696 = vpop.f32.mrb[0].mxu0
        %v697 = vadd.f32 %v451, %v696
        %698 = vmatprep.mubr.f32.mxu0 0.0
        %699 = vmatmul.mubr.f32.gmra.mrb[0].mxu0 %v257
        %v700 = vpop.f32.mrb[0].mxu0
        %v701 = vadd.f32 %v456, %v700
        %v702 = vpop.f32.mrb[0].mxu0
        %v703 = vadd.f32 %v456, %v702
        %704 = vmatprep.mubr.f32.mxu0 0.0
        %705 = vmatmul.mubr.f32.gmra.mrb[0].mxu0 %v258
        %v706 = vpop.f32.mrb[0].mxu0
        %v707 = vadd.f32 %v461, %v706
        %v708 = vpop.f32.mrb[0].mxu0
        %v709 = vadd.f32 %v461, %v708
        %710 = vmatprep.mubr.f32.mxu0 0.0
        %711 = vmatmul.mubr.f32.gmra.mrb[0].mxu0 %v259
        %v712 = vpop.f32.mrb[0].mxu0
        %v713 = vadd.f32 %v466, %v712
        %v714 = vpop.f32.mrb[0].mxu0
        %v715 = vadd.f32 %v466, %v714
        %716 = vmatprep.mubr.f32.mxu0 0.0
        %717 = vmatmul.mubr.f32.gmra.mrb[0].mxu0 %v260
        %v718 = vpop.f32.mrb[0].mxu0
        %v719 = vadd.f32 %v471, %v718
        %v720 = vpop.f32.mrb[0].mxu0
        %v721 = vadd.f32 %v471, %v720
        %722 = vmatprep.mubr.f32.mxu0 0.0
        %723 = vmatmul.mubr.f32.gmra.mrb[0].mxu0 %v261
        %v724 = vpop.f32.mrb[0].mxu0
        %v725 = vadd.f32 %v476, %v724
        %v726 = vpop.f32.mrb[0].mxu0
        %v727 = vadd.f32 %v476, %v726
        %728 = vmatprep.mubr.f32.mxu0 0.0
        %729 = vmatmul.mubr.f32.gmra.mrb[0].mxu0 %v262
        %v730 = vpop.f32.mrb[0].mxu0
        %v731 = vadd.f32 %v481, %v730
        %v732 = vpop.f32.mrb[0].mxu0
        %v733 = vadd.f32 %v481, %v732
        %734 = vmatprep.mubr.f32.mxu0 0.0
        %735 = vmatmul.mubr.f32.gmra.mrb[0].mxu0 %v263
        %v736 = vpop.f32.mrb[0].mxu0
        %v737 = vadd.f32 %v486, %v736
        %v738 = vpop.f32.mrb[0].mxu0
        %v739 = vadd.f32 %v486, %v738
        %740 = vmatprep.mubr.f32.mxu0 0.0
        %741 = vmatmul.mubr.f32.gmra.mrb[0].mxu0 %v264
        %v742 = vpop.f32.mrb[0].mxu0
        %v743 = vadd.f32 %v491, %v742
        %v744 = vpop.f32.mrb[0].mxu0
        %v745 = vadd.f32 %v491, %v744
        %746 = vmatprep.mubr.f32.mxu0 0.0
        %747 = vmatmul.mubr.f32.gmra.mrb[0].mxu0 %v265
        %v748 = vpop.f32.mrb[0].mxu0
        %v749 = vadd.f32 %v496, %v748
        %v750 = vpop.f32.mrb[0].mxu0
        %v751 = vadd.f32 %v496, %v750
        %752 = vmatprep.mubr.f32.mxu0 0.0
        %753 = vmatmul.mubr.f32.gmra.mrb[0].mxu0 %v266
        %v754 = vpop.f32.mrb[0].mxu0
        %v755 = vadd.f32 %v501, %v754
        %v756 = vpop.f32.mrb[0].mxu0
        %v757 = vadd.f32 %v501, %v756
        %758 = vmatprep.mubr.f32.mxu0 0.0
        %759 = vmatmul.mubr.f32.gmra.mrb[0].mxu0 %v267
        %v760 = vpop.f32.mrb[0].mxu0
        %v761 = vadd.f32 %v506, %v760
        %v762 = vpop.f32.mrb[0].mxu0
        %v763 = vadd.f32 %v506, %v762
        %764 = vdwg.mxu0
        %765 = vmatprep.subr.mxu0 0.0
        %766 = vmatpush1.msra.mxu0 %v270
        %767 = vmatprep.subr.mxu0 0.0
        %768 = vmatpush1.msra.mxu0 %v273
        %769 = vmatprep.subr.mxu0 0.0
        %770 = vmatpush1.msra.mxu0 %v276
        %771 = vmatprep.subr.mxu0 0.0
        %772 = vmatpush1.msra.mxu0 %v279
        %773 = vmatprep.subr.mxu0 0.0
        %774 = vmatpush1.msra.mxu0 %v282
        %775 = vmatprep.subr.mxu0 0.0
        %776 = vmatpush1.msra.mxu0 %v285
        %777 = vmatprep.subr.mxu0 0.0
        %778 = vmatpush1.msra.mxu0 %v288
        %779 = vmatprep.subr.mxu0 0.0
        %780 = vmatpush1.msra.mxu0 %v291
        %781 = vmatprep.subr.mxu0 0.0
        %782 = vmatpush1.msra.mxu0 %v294
        %783 = vmatprep.subr.mxu0 0.0
        %784 = vmatpush1.msra.mxu0 %v297
        %785 = vmatprep.subr.mxu0 0.0
        %786 = vmatpush1.msra.mxu0 %v300
        %787 = vmatprep.subr.mxu0 0.0
        %788 = vmatpush1.msra.mxu0 %v303
        %789 = vmatprep.subr.mxu0 0.0
        %790 = vmatpush1.msra.mxu0 %v306
        %791 = vmatprep.subr.mxu0 0.0
        %792 = vmatpush1.msra.mxu0 %v309
        %793 = vmatprep.subr.mxu0 0.0
        %794 = vmatpush1.msra.mxu0 %v312
        %795 = vmatprep.subr.mxu0 0.0
        %796 = vmatpush1.msra.mxu0 %v315
        %797 = vmatprep.subr.mxu0 0.0
        %798 = vmatpush1.msra.mxu0 0.0
        %799 = vmatprep.subr.mxu0 0.0
        %800 = vmatpush1.msra.mxu0 0.0
        %801 = vmatprep.subr.mxu0 0.0
        %802 = vmatpush1.msra.mxu0 0.0
        %803 = vmatprep.subr.mxu0 0.0
        %804 = vmatpush1.msra.mxu0 0.0
        %805 = vmatprep.subr.mxu0 0.0
        %806 = vmatpush1.msra.mxu0 0.0
        %807 = vmatprep.subr.mxu0 0.0
        %808 = vmatpush1.msra.mxu0 0.0
        %809 = vmatprep.subr.mxu0 0.0
        %810 = vmatpush1.msra.mxu0 0.0
        %811 = vmatprep.subr.mxu0 0.0
        %812 = vmatpush1.msra.mxu0 0.0
        %813 = vmatprep.subr.mxu0 0.0
        %814 = vmatpush1.msra.mxu0 0.0
        %815 = vmatprep.subr.mxu0 0.0
        %816 = vmatpush1.msra.mxu0 0.0
        %817 = vmatprep.subr.mxu0 0.0
        %818 = vmatpush1.msra.mxu0 0.0
        %819 = vmatprep.subr.mxu0 0.0
        %820 = vmatpush1.msra.mxu0 0.0
        %821 = vmatprep.subr.mxu0 0.0
        %822 = vmatpush1.msra.mxu0 0.0
        %823 = vmatprep.subr.mxu0 0.0
        %824 = vmatpush1.msra.mxu0 0.0
        %825 = vmatprep.subr.mxu0 0.0
        %826 = vmatpush1.msra.mxu0 0.0
        %827 = vmatprep.subr.mxu0 0.0
        %828 = vmatpush1.msra.mxu0 0.0
        %829 = vmatprep.mubr.f32.mxu0 0.0
        %830 = vmatmul.mubr.f32.gmra.mrb[0].mxu0 %v236
        %v831 = vpop.f32.mrb[0].mxu0
        %v832 = vadd.f32 %v351, %v831
        %v833 = vpop.f32.mrb[0].mxu0
        %834 = vmatprep.mubr.f32.mxu0 0.0
        %835 = vmatmul.mubr.f32.gmra.mrb[0].mxu0 %v237
        %v836 = vpop.f32.mrb[0].mxu0
        %v837 = vadd.f32 %v356, %v836
        %v838 = vpop.f32.mrb[0].mxu0
        %839 = vmatprep.mubr.f32.mxu0 0.0
        %840 = vmatmul.mubr.f32.gmra.mrb[0].mxu0 %v238
        %v841 = vpop.f32.mrb[0].mxu0
        %v842 = vadd.f32 %v361, %v841
        %v843 = vpop.f32.mrb[0].mxu0
        %844 = vmatprep.mubr.f32.mxu0 0.0
        %845 = vmatmul.mubr.f32.gmra.mrb[0].mxu0 %v239
        %v846 = vpop.f32.mrb[0].mxu0
        %v847 = vadd.f32 %v366, %v846
        %v848 = vpop.f32.mrb[0].mxu0
        %849 = vmatprep.mubr.f32.mxu0 0.0
        %850 = vmatmul.mubr.f32.gmra.mrb[0].mxu0 %v240
        %v851 = vpop.f32.mrb[0].mxu0
        %v852 = vadd.f32 %v371, %v851
        %v853 = vpop.f32.mrb[0].mxu0
        %854 = vmatprep.mubr.f32.mxu0 0.0
        %855 = vmatmul.mubr.f32.gmra.mrb[0].mxu0 %v241
        %v856 = vpop.f32.mrb[0].mxu0
        %v857 = vadd.f32 %v376, %v856
        %v858 = vpop.f32.mrb[0].mxu0
        %859 = vmatprep.mubr.f32.mxu0 0.0
        %860 = vmatmul.mubr.f32.gmra.mrb[0].mxu0 %v242
        %v861 = vpop.f32.mrb[0].mxu0
        %v862 = vadd.f32 %v381, %v861
        %v863 = vpop.f32.mrb[0].mxu0
        %864 = vmatprep.mubr.f32.mxu0 0.0
        %865 = vmatmul.mubr.f32.gmra.mrb[0].mxu0 %v243
        %v866 = vpop.f32.mrb[0].mxu0
        %v867 = vadd.f32 %v386, %v866
        %v868 = vpop.f32.mrb[0].mxu0
        %869 = vmatprep.mubr.f32.mxu0 0.0
        %870 = vmatmul.mubr.f32.gmra.mrb[0].mxu0 %v244
        %v871 = vpop.f32.mrb[0].mxu0
        %v872 = vadd.f32 %v391, %v871
        %v873 = vpop.f32.mrb[0].mxu0
        %874 = vmatprep.mubr.f32.mxu0 0.0
        %875 = vmatmul.mubr.f32.gmra.mrb[0].mxu0 %v245
        %v876 = vpop.f32.mrb[0].mxu0
        %v877 = vadd.f32 %v396, %v876
        %v878 = vpop.f32.mrb[0].mxu0
        %879 = vmatprep.mubr.f32.mxu0 0.0
        %880 = vmatmul.mubr.f32.gmra.mrb[0].mxu0 %v246
        %v881 = vpop.f32.mrb[0].mxu0
        %v882 = vadd.f32 %v401, %v881
        %v883 = vpop.f32.mrb[0].mxu0
        %884 = vmatprep.mubr.f32.mxu0 0.0
        %885 = vmatmul.mubr.f32.gmra.mrb[0].mxu0 %v247
        %v886 = vpop.f32.mrb[0].mxu0
        %v887 = vadd.f32 %v406, %v886
        %v888 = vpop.f32.mrb[0].mxu0
        %889 = vmatprep.mubr.f32.mxu0 0.0
        %890 = vmatmul.mubr.f32.gmra.mrb[0].mxu0 %v248
        %v891 = vpop.f32.mrb[0].mxu0
        %v892 = vadd.f32 %v411, %v891
        %v893 = vpop.f32.mrb[0].mxu0
        %894 = vmatprep.mubr.f32.mxu0 0.0
        %895 = vmatmul.mubr.f32.gmra.mrb[0].mxu0 %v249
        %v896 = vpop.f32.mrb[0].mxu0
        %v897 = vadd.f32 %v416, %v896
        %v898 = vpop.f32.mrb[0].mxu0
        %899 = vmatprep.mubr.f32.mxu0 0.0
        %900 = vmatmul.mubr.f32.gmra.mrb[0].mxu0 %v250
        %v901 = vpop.f32.mrb[0].mxu0
        %v902 = vadd.f32 %v421, %v901
        %v903 = vpop.f32.mrb[0].mxu0
        %904 = vmatprep.mubr.f32.mxu0 0.0
        %905 = vmatmul.mubr.f32.gmra.mrb[0].mxu0 %v251
        %v906 = vpop.f32.mrb[0].mxu0
        %v907 = vadd.f32 %v426, %v906
        %v908 = vpop.f32.mrb[0].mxu0
        %909 = vmatprep.mubr.f32.mxu0 0.0
        %910 = vmatmul.mubr.f32.gmra.mrb[0].mxu0 %v252
        %v911 = vpop.f32.mrb[0].mxu0
        %v912 = vadd.f32 %v431, %v911
        %v913 = vpop.f32.mrb[0].mxu0
        %914 = vmatprep.mubr.f32.mxu0 0.0
        %915 = vmatmul.mubr.f32.gmra.mrb[0].mxu0 %v253
        %v916 = vpop.f32.mrb[0].mxu0
        %v917 = vadd.f32 %v436, %v916
        %v918 = vpop.f32.mrb[0].mxu0
        %919 = vmatprep.mubr.f32.mxu0 0.0
        %920 = vmatmul.mubr.f32.gmra.mrb[0].mxu0 %v254
        %v921 = vpop.f32.mrb[0].mxu0
        %v922 = vadd.f32 %v441, %v921
        %v923 = vpop.f32.mrb[0].mxu0
        %924 = vmatprep.mubr.f32.mxu0 0.0
        %925 = vmatmul.mubr.f32.gmra.mrb[0].mxu0 %v255
        %v926 = vpop.f32.mrb[0].mxu0
        %v927 = vadd.f32 %v446, %v926
        %v928 = vpop.f32.mrb[0].mxu0
        %929 = vmatprep.mubr.f32.mxu0 0.0
        %930 = vmatmul.mubr.f32.gmra.mrb[0].mxu0 %v256
        %v931 = vpop.f32.mrb[0].mxu0
        %v932 = vadd.f32 %v451, %v931
        %v933 = vpop.f32.mrb[0].mxu0
        %934 = vmatprep.mubr.f32.mxu0 0.0
        %935 = vmatmul.mubr.f32.gmra.mrb[0].mxu0 %v257
        %v936 = vpop.f32.mrb[0].mxu0
        %v937 = vadd.f32 %v456, %v936
        %v938 = vpop.f32.mrb[0].mxu0
        %939 = vmatprep.mubr.f32.mxu0 0.0
        %940 = vmatmul.mubr.f32.gmra.mrb[0].mxu0 %v258
        %v941 = vpop.f32.mrb[0].mxu0
        %v942 = vadd.f32 %v461, %v941
        %v943 = vpop.f32.mrb[0].mxu0
        %944 = vmatprep.mubr.f32.mxu0 0.0
        %945 = vmatmul.mubr.f32.gmra.mrb[0].mxu0 %v259
        %v946 = vpop.f32.mrb[0].mxu0
        %v947 = vadd.f32 %v466, %v946
        %v948 = vpop.f32.mrb[0].mxu0
        %949 = vmatprep.mubr.f32.mxu0 0.0
        %950 = vmatmul.mubr.f32.gmra.mrb[0].mxu0 %v260
        %v951 = vpop.f32.mrb[0].mxu0
        %v952 = vadd.f32 %v471, %v951
        %v953 = vpop.f32.mrb[0].mxu0
        %954 = vmatprep.mubr.f32.mxu0 0.0
        %955 = vmatmul.mubr.f32.gmra.mrb[0].mxu0 %v261
        %v956 = vpop.f32.mrb[0].mxu0
        %v957 = vadd.f32 %v476, %v956
        %v958 = vpop.f32.mrb[0].mxu0
        %959 = vmatprep.mubr.f32.mxu0 0.0
        %960 = vmatmul.mubr.f32.gmra.mrb[0].mxu0 %v262
        %v961 = vpop.f32.mrb[0].mxu0
        %v962 = vadd.f32 %v481, %v961
        %v963 = vpop.f32.mrb[0].mxu0
        %964 = vmatprep.mubr.f32.mxu0 0.0
        %965 = vmatmul.mubr.f32.gmra.mrb[0].mxu0 %v263
        %v966 = vpop.f32.mrb[0].mxu0
        %v967 = vadd.f32 %v486, %v966
        %v968 = vpop.f32.mrb[0].mxu0
        %969 = vmatprep.mubr.f32.mxu0 0.0
        %970 = vmatmul.mubr.f32.gmra.mrb[0].mxu0 %v264
        %v971 = vpop.f32.mrb[0].mxu0
        %v972 = vadd.f32 %v491, %v971
        %v973 = vpop.f32.mrb[0].mxu0
        %974 = vmatprep.mubr.f32.mxu0 0.0
        %975 = vmatmul.mubr.f32.gmra.mrb[0].mxu0 %v265
        %v976 = vpop.f32.mrb[0].mxu0
        %v977 = vadd.f32 %v496, %v976
        %v978 = vpop.f32.mrb[0].mxu0
        %979 = vmatprep.mubr.f32.mxu0 0.0
        %980 = vmatmul.mubr.f32.gmra.mrb[0].mxu0 %v266
        %v981 = vpop.f32.mrb[0].mxu0
        %v982 = vadd.f32 %v501, %v981
        %v983 = vpop.f32.mrb[0].mxu0
        %984 = vmatprep.mubr.f32.mxu0 0.0
        %985 = vmatmul.mubr.f32.gmra.mrb[0].mxu0 %v267
        %v986 = vpop.f32.mrb[0].mxu0
        %v987 = vadd.f32 %v506, %v986
        %v988 = vpop.f32.mrb[0].mxu0
        %989 = vdwg.mxu0
        %v990 = vld [vmem:[%s3] sm:$0x7]
        %v992 = vlaneseq
        %v993 = vshrl.u32 %v992, 7
        %v994 = vsub.s32 0, %v993
        %v995 = vrot.slane %v990, %v994
        %v996 = vlaneseq
        %v997 = vshrl.u32 %v996, 7
        %v998 = vsub.s32 1, %v997
        %v999 = vrot.slane %v990, %v998
        %v1000 = vlaneseq
        %v1001 = vshrl.u32 %v1000, 7
        %v1002 = vsub.s32 2, %v1001
        %v1003 = vrot.slane %v990, %v1002
        %v1007 = vadd.f32 %v575, %v995
        %v1008 = vadd.f32 %v577, %v999
        %v1009 = vadd.f32 %v832, %v1003
        %v1010 = vadd.f32 %v581, %v995
        %v1011 = vadd.f32 %v583, %v999
        %v1012 = vadd.f32 %v837, %v1003
        %v1013 = vadd.f32 %v587, %v995
        %v1014 = vadd.f32 %v589, %v999
        %v1015 = vadd.f32 %v842, %v1003
        %v1016 = vadd.f32 %v593, %v995
        %v1017 = vadd.f32 %v595, %v999
        %v1018 = vadd.f32 %v847, %v1003
        %v1019 = vadd.f32 %v599, %v995
        %v1020 = vadd.f32 %v601, %v999
        %v1021 = vadd.f32 %v852, %v1003
        %v1022 = vadd.f32 %v605, %v995
        %v1023 = vadd.f32 %v607, %v999
        %v1024 = vadd.f32 %v857, %v1003
        %v1025 = vadd.f32 %v611, %v995
        %v1026 = vadd.f32 %v613, %v999
        %v1027 = vadd.f32 %v862, %v1003
        %v1028 = vadd.f32 %v617, %v995
        %v1029 = vadd.f32 %v619, %v999
        %v1030 = vadd.f32 %v867, %v1003
        %v1031 = vadd.f32 %v623, %v995
        %v1032 = vadd.f32 %v625, %v999
        %v1033 = vadd.f32 %v872, %v1003
        %v1034 = vadd.f32 %v629, %v995
        %v1035 = vadd.f32 %v631, %v999
        %v1036 = vadd.f32 %v877, %v1003
        %v1037 = vadd.f32 %v635, %v995
        %v1038 = vadd.f32 %v637, %v999
        %v1039 = vadd.f32 %v882, %v1003
        %v1040 = vadd.f32 %v641, %v995
        %v1041 = vadd.f32 %v643, %v999
        %v1042 = vadd.f32 %v887, %v1003
        %v1043 = vadd.f32 %v647, %v995
        %v1044 = vadd.f32 %v649, %v999
        %v1045 = vadd.f32 %v892, %v1003
        %v1046 = vadd.f32 %v653, %v995
        %v1047 = vadd.f32 %v655, %v999
        %v1048 = vadd.f32 %v897, %v1003
        %v1049 = vadd.f32 %v659, %v995
        %v1050 = vadd.f32 %v661, %v999
        %v1051 = vadd.f32 %v902, %v1003
        %v1052 = vadd.f32 %v665, %v995
        %v1053 = vadd.f32 %v667, %v999
        %v1054 = vadd.f32 %v907, %v1003
        %v1055 = vadd.f32 %v671, %v995
        %v1056 = vadd.f32 %v673, %v999
        %v1057 = vadd.f32 %v912, %v1003
        %v1058 = vadd.f32 %v677, %v995
        %v1059 = vadd.f32 %v679, %v999
        %v1060 = vadd.f32 %v917, %v1003
        %v1061 = vadd.f32 %v683, %v995
        %v1062 = vadd.f32 %v685, %v999
        %v1063 = vadd.f32 %v922, %v1003
        %v1064 = vadd.f32 %v689, %v995
        %v1065 = vadd.f32 %v691, %v999
        %v1066 = vadd.f32 %v927, %v1003
        %v1067 = vadd.f32 %v695, %v995
        %v1068 = vadd.f32 %v697, %v999
        %v1069 = vadd.f32 %v932, %v1003
        %v1070 = vadd.f32 %v701, %v995
        %v1071 = vadd.f32 %v703, %v999
        %v1072 = vadd.f32 %v937, %v1003
        %v1073 = vadd.f32 %v707, %v995
        %v1074 = vadd.f32 %v709, %v999
        %v1075 = vadd.f32 %v942, %v1003
        %v1076 = vadd.f32 %v713, %v995
        %v1077 = vadd.f32 %v715, %v999
        %v1078 = vadd.f32 %v947, %v1003
        %v1079 = vadd.f32 %v719, %v995
        %v1080 = vadd.f32 %v721, %v999
        %v1081 = vadd.f32 %v952, %v1003
        %v1082 = vadd.f32 %v725, %v995
        %v1083 = vadd.f32 %v727, %v999
        %v1084 = vadd.f32 %v957, %v1003
        %v1085 = vadd.f32 %v731, %v995
        %v1086 = vadd.f32 %v733, %v999
        %v1087 = vadd.f32 %v962, %v1003
        %v1088 = vadd.f32 %v737, %v995
        %v1089 = vadd.f32 %v739, %v999
        %v1090 = vadd.f32 %v967, %v1003
        %v1091 = vadd.f32 %v743, %v995
        %v1092 = vadd.f32 %v745, %v999
        %v1093 = vadd.f32 %v972, %v1003
        %v1094 = vadd.f32 %v749, %v995
        %v1095 = vadd.f32 %v751, %v999
        %v1096 = vadd.f32 %v977, %v1003
        %v1097 = vadd.f32 %v755, %v995
        %v1098 = vadd.f32 %v757, %v999
        %v1099 = vadd.f32 %v982, %v1003
        %v1100 = vadd.f32 %v761, %v995
        %v1101 = vadd.f32 %v763, %v999
        %v1102 = vadd.f32 %v987, %v1003
        %v1103 = vmax.f32 %v1007, 0.0
        %v1104 = vmax.f32 %v1008, 0.0
        %v1105 = vmax.f32 %v1009, 0.0
        %v1106 = vmax.f32 %v1010, 0.0
        %v1107 = vmax.f32 %v1011, 0.0
        %v1108 = vmax.f32 %v1012, 0.0
        %v1109 = vmax.f32 %v1013, 0.0
        %v1110 = vmax.f32 %v1014, 0.0
        %v1111 = vmax.f32 %v1015, 0.0
        %v1112 = vmax.f32 %v1016, 0.0
        %v1113 = vmax.f32 %v1017, 0.0
        %v1114 = vmax.f32 %v1018, 0.0
        %v1115 = vmax.f32 %v1019, 0.0
        %v1116 = vmax.f32 %v1020, 0.0
        %v1117 = vmax.f32 %v1021, 0.0
        %v1118 = vmax.f32 %v1022, 0.0
        %v1119 = vmax.f32 %v1023, 0.0
        %v1120 = vmax.f32 %v1024, 0.0
        %v1121 = vmax.f32 %v1025, 0.0
        %v1122 = vmax.f32 %v1026, 0.0
        %v1123 = vmax.f32 %v1027, 0.0
        %v1124 = vmax.f32 %v1028, 0.0
        %v1125 = vmax.f32 %v1029, 0.0
        %v1126 = vmax.f32 %v1030, 0.0
        %v1127 = vmax.f32 %v1031, 0.0
        %v1128 = vmax.f32 %v1032, 0.0
        %v1129 = vmax.f32 %v1033, 0.0
        %v1130 = vmax.f32 %v1034, 0.0
        %v1131 = vmax.f32 %v1035, 0.0
        %v1132 = vmax.f32 %v1036, 0.0
        %v1133 = vmax.f32 %v1037, 0.0
        %v1134 = vmax.f32 %v1038, 0.0
        %v1135 = vmax.f32 %v1039, 0.0
        %v1136 = vmax.f32 %v1040, 0.0
        %v1137 = vmax.f32 %v1041, 0.0
        %v1138 = vmax.f32 %v1042, 0.0
        %v1139 = vmax.f32 %v1043, 0.0
        %v1140 = vmax.f32 %v1044, 0.0
        %v1141 = vmax.f32 %v1045, 0.0
        %v1142 = vmax.f32 %v1046, 0.0
        %v1143 = vmax.f32 %v1047, 0.0
        %v1144 = vmax.f32 %v1048, 0.0
        %v1145 = vmax.f32 %v1049, 0.0
        %v1146 = vmax.f32 %v1050, 0.0
        %v1147 = vmax.f32 %v1051, 0.0
        %v1148 = vmax.f32 %v1052, 0.0
        %v1149 = vmax.f32 %v1053, 0.0
        %v1150 = vmax.f32 %v1054, 0.0
        %v1151 = vmax.f32 %v1055, 0.0
        %v1152 = vmax.f32 %v1056, 0.0
        %v1153 = vmax.f32 %v1057, 0.0
        %v1154 = vmax.f32 %v1058, 0.0
        %v1155 = vmax.f32 %v1059, 0.0
        %v1156 = vmax.f32 %v1060, 0.0
        %v1157 = vmax.f32 %v1061, 0.0
        %v1158 = vmax.f32 %v1062, 0.0
        %v1159 = vmax.f32 %v1063, 0.0
        %v1160 = vmax.f32 %v1064, 0.0
        %v1161 = vmax.f32 %v1065, 0.0
        %v1162 = vmax.f32 %v1066, 0.0
        %v1163 = vmax.f32 %v1067, 0.0
        %v1164 = vmax.f32 %v1068, 0.0
        %v1165 = vmax.f32 %v1069, 0.0
        %v1166 = vmax.f32 %v1070, 0.0
        %v1167 = vmax.f32 %v1071, 0.0
        %v1168 = vmax.f32 %v1072, 0.0
        %v1169 = vmax.f32 %v1073, 0.0
        %v1170 = vmax.f32 %v1074, 0.0
        %v1171 = vmax.f32 %v1075, 0.0
        %v1172 = vmax.f32 %v1076, 0.0
        %v1173 = vmax.f32 %v1077, 0.0
        %v1174 = vmax.f32 %v1078, 0.0
        %v1175 = vmax.f32 %v1079, 0.0
        %v1176 = vmax.f32 %v1080, 0.0
        %v1177 = vmax.f32 %v1081, 0.0
        %v1178 = vmax.f32 %v1082, 0.0
        %v1179 = vmax.f32 %v1083, 0.0
        %v1180 = vmax.f32 %v1084, 0.0
        %v1181 = vmax.f32 %v1085, 0.0
        %v1182 = vmax.f32 %v1086, 0.0
        %v1183 = vmax.f32 %v1087, 0.0
        %v1184 = vmax.f32 %v1088, 0.0
        %v1185 = vmax.f32 %v1089, 0.0
        %v1186 = vmax.f32 %v1090, 0.0
        %v1187 = vmax.f32 %v1091, 0.0
        %v1188 = vmax.f32 %v1092, 0.0
        %v1189 = vmax.f32 %v1093, 0.0
        %v1190 = vmax.f32 %v1094, 0.0
        %v1191 = vmax.f32 %v1095, 0.0
        %v1192 = vmax.f32 %v1096, 0.0
        %v1193 = vmax.f32 %v1097, 0.0
        %v1194 = vmax.f32 %v1098, 0.0
        %v1195 = vmax.f32 %v1099, 0.0
        %v1196 = vmax.f32 %v1100, 0.0
        %v1197 = vmax.f32 %v1101, 0.0
        %v1198 = vmax.f32 %v1102, 0.0
        %s1199 = smul.u32 %s19, 256
        %v1200 = vlaneseq
        %v1201 = vshrl.u32 %v1200, 7
        %v1202 = vadd.s32 %v1201, 8
        %v1203 = vadd.s32 %v1201, 16
        %v1204 = vadd.s32 %v1201, 24
        %v1205 = vadd.s32 %v1201, 32
        %v1206 = vadd.s32 %v1201, 40
        %v1207 = vadd.s32 %v1201, 48
        %v1208 = vadd.s32 %v1201, 56
        %v1209 = vadd.s32 %v1201, 64
        %v1210 = vadd.s32 %v1201, 72
        %v1211 = vadd.s32 %v1201, 80
        %v1212 = vadd.s32 %v1201, 88
        %v1213 = vadd.s32 %v1201, 96
        %v1214 = vadd.s32 %v1201, 104
        %v1215 = vadd.s32 %v1201, 112
        %v1216 = vadd.s32 %v1201, 120
        %v1217 = vadd.s32 %v1201, 128
        %v1218 = vadd.s32 %v1201, 136
        %v1219 = vadd.s32 %v1201, 144
        %v1220 = vadd.s32 %v1201, 152
        %v1221 = vadd.s32 %v1201, 160
        %v1222 = vadd.s32 %v1201, 168
        %v1223 = vadd.s32 %v1201, 176
        %v1224 = vadd.s32 %v1201, 184
        %v1225 = vadd.s32 %v1201, 192
        %v1226 = vadd.s32 %v1201, 200
        %v1227 = vadd.s32 %v1201, 208
        %v1228 = vadd.s32 %v1201, 216
        %v1229 = vadd.s32 %v1201, 224
        %v1230 = vadd.s32 %v1201, 232
        %v1231 = vadd.s32 %v1201, 240
        %v1232 = vadd.s32 %v1201, 248
        %v1233 = vstv %s1199
        %v1234 = vadd.s32 %v1233, %v1201
        %v1235 = vadd.s32 %v1233, %v1202
        %v1236 = vadd.s32 %v1233, %v1203
        %v1237 = vadd.s32 %v1233, %v1204
        %v1238 = vadd.s32 %v1233, %v1205
        %v1239 = vadd.s32 %v1233, %v1206
        %v1240 = vadd.s32 %v1233, %v1207
        %v1241 = vadd.s32 %v1233, %v1208
        %v1242 = vadd.s32 %v1233, %v1209
        %v1243 = vadd.s32 %v1233, %v1210
        %v1244 = vadd.s32 %v1233, %v1211
        %v1245 = vadd.s32 %v1233, %v1212
        %v1246 = vadd.s32 %v1233, %v1213
        %v1247 = vadd.s32 %v1233, %v1214
        %v1248 = vadd.s32 %v1233, %v1215
        %v1249 = vadd.s32 %v1233, %v1216
        %v1250 = vadd.s32 %v1233, %v1217
        %v1251 = vadd.s32 %v1233, %v1218
        %v1252 = vadd.s32 %v1233, %v1219
        %v1253 = vadd.s32 %v1233, %v1220
        %v1254 = vadd.s32 %v1233, %v1221
        %v1255 = vadd.s32 %v1233, %v1222
        %v1256 = vadd.s32 %v1233, %v1223
        %v1257 = vadd.s32 %v1233, %v1224
        %v1258 = vadd.s32 %v1233, %v1225
        %v1259 = vadd.s32 %v1233, %v1226
        %v1260 = vadd.s32 %v1233, %v1227
        %v1261 = vadd.s32 %v1233, %v1228
        %v1262 = vadd.s32 %v1233, %v1229
        %v1263 = vadd.s32 %v1233, %v1230
        %v1264 = vadd.s32 %v1233, %v1231
        %v1265 = vadd.s32 %v1233, %v1232
        %v1266 = vlaneseq
        %v1267 = vand.u32 %v1266, 127
        %v1268 = vadd.s32 %v1267, 128
        %v1269 = vadd.s32 %v1267, 256
        %vm1270 = vcmp.eq.s32.totalorder %v1234, %v1267
        %vm1271 = vcmp.eq.s32.totalorder %v1234, %v1268
        %vm1272 = vcmp.eq.s32.totalorder %v1234, %v1269
        %vm1273 = vcmp.eq.s32.totalorder %v1235, %v1267
        %vm1274 = vcmp.eq.s32.totalorder %v1235, %v1268
        %vm1275 = vcmp.eq.s32.totalorder %v1235, %v1269
        %vm1276 = vcmp.eq.s32.totalorder %v1236, %v1267
        %vm1277 = vcmp.eq.s32.totalorder %v1236, %v1268
        %vm1278 = vcmp.eq.s32.totalorder %v1236, %v1269
        %vm1279 = vcmp.eq.s32.totalorder %v1237, %v1267
        %vm1280 = vcmp.eq.s32.totalorder %v1237, %v1268
        %vm1281 = vcmp.eq.s32.totalorder %v1237, %v1269
        %vm1282 = vcmp.eq.s32.totalorder %v1238, %v1267
        %vm1283 = vcmp.eq.s32.totalorder %v1238, %v1268
        %vm1284 = vcmp.eq.s32.totalorder %v1238, %v1269
        %vm1285 = vcmp.eq.s32.totalorder %v1239, %v1267
        %vm1286 = vcmp.eq.s32.totalorder %v1239, %v1268
        %vm1287 = vcmp.eq.s32.totalorder %v1239, %v1269
        %vm1288 = vcmp.eq.s32.totalorder %v1240, %v1267
        %vm1289 = vcmp.eq.s32.totalorder %v1240, %v1268
        %vm1290 = vcmp.eq.s32.totalorder %v1240, %v1269
        %vm1291 = vcmp.eq.s32.totalorder %v1241, %v1267
        %vm1292 = vcmp.eq.s32.totalorder %v1241, %v1268
        %vm1293 = vcmp.eq.s32.totalorder %v1241, %v1269
        %vm1294 = vcmp.eq.s32.totalorder %v1242, %v1267
        %vm1295 = vcmp.eq.s32.totalorder %v1242, %v1268
        %vm1296 = vcmp.eq.s32.totalorder %v1242, %v1269
        %vm1297 = vcmp.eq.s32.totalorder %v1243, %v1267
        %vm1298 = vcmp.eq.s32.totalorder %v1243, %v1268
        %vm1299 = vcmp.eq.s32.totalorder %v1243, %v1269
        %vm1300 = vcmp.eq.s32.totalorder %v1244, %v1267
        %vm1301 = vcmp.eq.s32.totalorder %v1244, %v1268
        %vm1302 = vcmp.eq.s32.totalorder %v1244, %v1269
        %vm1303 = vcmp.eq.s32.totalorder %v1245, %v1267
        %vm1304 = vcmp.eq.s32.totalorder %v1245, %v1268
        %vm1305 = vcmp.eq.s32.totalorder %v1245, %v1269
        %vm1306 = vcmp.eq.s32.totalorder %v1246, %v1267
        %vm1307 = vcmp.eq.s32.totalorder %v1246, %v1268
        %vm1308 = vcmp.eq.s32.totalorder %v1246, %v1269
        %vm1309 = vcmp.eq.s32.totalorder %v1247, %v1267
        %vm1310 = vcmp.eq.s32.totalorder %v1247, %v1268
        %vm1311 = vcmp.eq.s32.totalorder %v1247, %v1269
        %vm1312 = vcmp.eq.s32.totalorder %v1248, %v1267
        %vm1313 = vcmp.eq.s32.totalorder %v1248, %v1268
        %vm1314 = vcmp.eq.s32.totalorder %v1248, %v1269
        %vm1315 = vcmp.eq.s32.totalorder %v1249, %v1267
        %vm1316 = vcmp.eq.s32.totalorder %v1249, %v1268
        %vm1317 = vcmp.eq.s32.totalorder %v1249, %v1269
        %vm1318 = vcmp.eq.s32.totalorder %v1250, %v1267
        %vm1319 = vcmp.eq.s32.totalorder %v1250, %v1268
        %vm1320 = vcmp.eq.s32.totalorder %v1250, %v1269
        %vm1321 = vcmp.eq.s32.totalorder %v1251, %v1267
        %vm1322 = vcmp.eq.s32.totalorder %v1251, %v1268
        %vm1323 = vcmp.eq.s32.totalorder %v1251, %v1269
        %vm1324 = vcmp.eq.s32.totalorder %v1252, %v1267
        %vm1325 = vcmp.eq.s32.totalorder %v1252, %v1268
        %vm1326 = vcmp.eq.s32.totalorder %v1252, %v1269
        %vm1327 = vcmp.eq.s32.totalorder %v1253, %v1267
        %vm1328 = vcmp.eq.s32.totalorder %v1253, %v1268
        %vm1329 = vcmp.eq.s32.totalorder %v1253, %v1269
        %vm1330 = vcmp.eq.s32.totalorder %v1254, %v1267
        %vm1331 = vcmp.eq.s32.totalorder %v1254, %v1268
        %vm1332 = vcmp.eq.s32.totalorder %v1254, %v1269
        %vm1333 = vcmp.eq.s32.totalorder %v1255, %v1267
        %vm1334 = vcmp.eq.s32.totalorder %v1255, %v1268
        %vm1335 = vcmp.eq.s32.totalorder %v1255, %v1269
        %vm1336 = vcmp.eq.s32.totalorder %v1256, %v1267
        %vm1337 = vcmp.eq.s32.totalorder %v1256, %v1268
        %vm1338 = vcmp.eq.s32.totalorder %v1256, %v1269
        %vm1339 = vcmp.eq.s32.totalorder %v1257, %v1267
        %vm1340 = vcmp.eq.s32.totalorder %v1257, %v1268
        %vm1341 = vcmp.eq.s32.totalorder %v1257, %v1269
        %vm1342 = vcmp.eq.s32.totalorder %v1258, %v1267
        %vm1343 = vcmp.eq.s32.totalorder %v1258, %v1268
        %vm1344 = vcmp.eq.s32.totalorder %v1258, %v1269
        %vm1345 = vcmp.eq.s32.totalorder %v1259, %v1267
        %vm1346 = vcmp.eq.s32.totalorder %v1259, %v1268
        %vm1347 = vcmp.eq.s32.totalorder %v1259, %v1269
        %vm1348 = vcmp.eq.s32.totalorder %v1260, %v1267
        %vm1349 = vcmp.eq.s32.totalorder %v1260, %v1268
        %vm1350 = vcmp.eq.s32.totalorder %v1260, %v1269
        %vm1351 = vcmp.eq.s32.totalorder %v1261, %v1267
        %vm1352 = vcmp.eq.s32.totalorder %v1261, %v1268
        %vm1353 = vcmp.eq.s32.totalorder %v1261, %v1269
        %vm1354 = vcmp.eq.s32.totalorder %v1262, %v1267
        %vm1355 = vcmp.eq.s32.totalorder %v1262, %v1268
        %vm1356 = vcmp.eq.s32.totalorder %v1262, %v1269
        %vm1357 = vcmp.eq.s32.totalorder %v1263, %v1267
        %vm1358 = vcmp.eq.s32.totalorder %v1263, %v1268
        %vm1359 = vcmp.eq.s32.totalorder %v1263, %v1269
        %vm1360 = vcmp.eq.s32.totalorder %v1264, %v1267
        %vm1361 = vcmp.eq.s32.totalorder %v1264, %v1268
        %vm1362 = vcmp.eq.s32.totalorder %v1264, %v1269
        %vm1363 = vcmp.eq.s32.totalorder %v1265, %v1267
        %vm1364 = vcmp.eq.s32.totalorder %v1265, %v1268
        %vm1365 = vcmp.eq.s32.totalorder %v1265, %v1269
        %v1366 = vsel %vm1270, 0.0, %v1103
        %v1367 = vsel %vm1271, 0.0, %v1104
        %v1368 = vsel %vm1272, 0.0, %v1105
        %v1369 = vsel %vm1273, 0.0, %v1106
        %v1370 = vsel %vm1274, 0.0, %v1107
        %v1371 = vsel %vm1275, 0.0, %v1108
        %v1372 = vsel %vm1276, 0.0, %v1109
        %v1373 = vsel %vm1277, 0.0, %v1110
        %v1374 = vsel %vm1278, 0.0, %v1111
        %v1375 = vsel %vm1279, 0.0, %v1112
        %v1376 = vsel %vm1280, 0.0, %v1113
        %v1377 = vsel %vm1281, 0.0, %v1114
        %v1378 = vsel %vm1282, 0.0, %v1115
        %v1379 = vsel %vm1283, 0.0, %v1116
        %v1380 = vsel %vm1284, 0.0, %v1117
        %v1381 = vsel %vm1285, 0.0, %v1118
        %v1382 = vsel %vm1286, 0.0, %v1119
        %v1383 = vsel %vm1287, 0.0, %v1120
        %v1384 = vsel %vm1288, 0.0, %v1121
        %v1385 = vsel %vm1289, 0.0, %v1122
        %v1386 = vsel %vm1290, 0.0, %v1123
        %v1387 = vsel %vm1291, 0.0, %v1124
        %v1388 = vsel %vm1292, 0.0, %v1125
        %v1389 = vsel %vm1293, 0.0, %v1126
        %v1390 = vsel %vm1294, 0.0, %v1127
        %v1391 = vsel %vm1295, 0.0, %v1128
        %v1392 = vsel %vm1296, 0.0, %v1129
        %v1393 = vsel %vm1297, 0.0, %v1130
        %v1394 = vsel %vm1298, 0.0, %v1131
        %v1395 = vsel %vm1299, 0.0, %v1132
        %v1396 = vsel %vm1300, 0.0, %v1133
        %v1397 = vsel %vm1301, 0.0, %v1134
        %v1398 = vsel %vm1302, 0.0, %v1135
        %v1399 = vsel %vm1303, 0.0, %v1136
        %v1400 = vsel %vm1304, 0.0, %v1137
        %v1401 = vsel %vm1305, 0.0, %v1138
        %v1402 = vsel %vm1306, 0.0, %v1139
        %v1403 = vsel %vm1307, 0.0, %v1140
        %v1404 = vsel %vm1308, 0.0, %v1141
        %v1405 = vsel %vm1309, 0.0, %v1142
        %v1406 = vsel %vm1310, 0.0, %v1143
        %v1407 = vsel %vm1311, 0.0, %v1144
        %v1408 = vsel %vm1312, 0.0, %v1145
        %v1409 = vsel %vm1313, 0.0, %v1146
        %v1410 = vsel %vm1314, 0.0, %v1147
        %v1411 = vsel %vm1315, 0.0, %v1148
        %v1412 = vsel %vm1316, 0.0, %v1149
        %v1413 = vsel %vm1317, 0.0, %v1150
        %v1414 = vsel %vm1318, 0.0, %v1151
        %v1415 = vsel %vm1319, 0.0, %v1152
        %v1416 = vsel %vm1320, 0.0, %v1153
        %v1417 = vsel %vm1321, 0.0, %v1154
        %v1418 = vsel %vm1322, 0.0, %v1155
        %v1419 = vsel %vm1323, 0.0, %v1156
        %v1420 = vsel %vm1324, 0.0, %v1157
        %v1421 = vsel %vm1325, 0.0, %v1158
        %v1422 = vsel %vm1326, 0.0, %v1159
        %v1423 = vsel %vm1327, 0.0, %v1160
        %v1424 = vsel %vm1328, 0.0, %v1161
        %v1425 = vsel %vm1329, 0.0, %v1162
        %v1426 = vsel %vm1330, 0.0, %v1163
        %v1427 = vsel %vm1331, 0.0, %v1164
        %v1428 = vsel %vm1332, 0.0, %v1165
        %v1429 = vsel %vm1333, 0.0, %v1166
        %v1430 = vsel %vm1334, 0.0, %v1167
        %v1431 = vsel %vm1335, 0.0, %v1168
        %v1432 = vsel %vm1336, 0.0, %v1169
        %v1433 = vsel %vm1337, 0.0, %v1170
        %v1434 = vsel %vm1338, 0.0, %v1171
        %v1435 = vsel %vm1339, 0.0, %v1172
        %v1436 = vsel %vm1340, 0.0, %v1173
        %v1437 = vsel %vm1341, 0.0, %v1174
        %v1438 = vsel %vm1342, 0.0, %v1175
        %v1439 = vsel %vm1343, 0.0, %v1176
        %v1440 = vsel %vm1344, 0.0, %v1177
        %v1441 = vsel %vm1345, 0.0, %v1178
        %v1442 = vsel %vm1346, 0.0, %v1179
        %v1443 = vsel %vm1347, 0.0, %v1180
        %v1444 = vsel %vm1348, 0.0, %v1181
        %v1445 = vsel %vm1349, 0.0, %v1182
        %v1446 = vsel %vm1350, 0.0, %v1183
        %v1447 = vsel %vm1351, 0.0, %v1184
        %v1448 = vsel %vm1352, 0.0, %v1185
        %v1449 = vsel %vm1353, 0.0, %v1186
        %v1450 = vsel %vm1354, 0.0, %v1187
        %v1451 = vsel %vm1355, 0.0, %v1188
        %v1452 = vsel %vm1356, 0.0, %v1189
        %v1453 = vsel %vm1357, 0.0, %v1190
        %v1454 = vsel %vm1358, 0.0, %v1191
        %v1455 = vsel %vm1359, 0.0, %v1192
        %v1456 = vsel %vm1360, 0.0, %v1193
        %v1457 = vsel %vm1361, 0.0, %v1194
        %v1458 = vsel %vm1362, 0.0, %v1195
        %v1459 = vsel %vm1363, 0.0, %v1196
        %v1460 = vsel %vm1364, 0.0, %v1197
        %v1461 = vsel %vm1365, 0.0, %v1198
        %v1462 = vadd.f32 %v1366, %v1367
        %v1463 = vadd.f32 %v1462, %v1368
        %1464 = vadd.xlane.f32.xlu0 %v1463
        %v1465 = vpop.xlane.xlu0 %1464
        %v1466 = vadd.f32 %v1369, %v1370
        %v1467 = vadd.f32 %v1466, %v1371
        %1468 = vadd.xlane.f32.xlu0 %v1467
        %v1469 = vpop.xlane.xlu0 %1468
        %v1470 = vadd.f32 %v1372, %v1373
        %v1471 = vadd.f32 %v1470, %v1374
        %1472 = vadd.xlane.f32.xlu0 %v1471
        %v1473 = vpop.xlane.xlu0 %1472
        %v1474 = vadd.f32 %v1375, %v1376
        %v1475 = vadd.f32 %v1474, %v1377
        %1476 = vadd.xlane.f32.xlu0 %v1475
        %v1477 = vpop.xlane.xlu0 %1476
        %v1478 = vadd.f32 %v1378, %v1379
        %v1479 = vadd.f32 %v1478, %v1380
        %1480 = vadd.xlane.f32.xlu0 %v1479
        %v1481 = vpop.xlane.xlu0 %1480
        %v1482 = vadd.f32 %v1381, %v1382
        %v1483 = vadd.f32 %v1482, %v1383
        %1484 = vadd.xlane.f32.xlu0 %v1483
        %v1485 = vpop.xlane.xlu0 %1484
        %v1486 = vadd.f32 %v1384, %v1385
        %v1487 = vadd.f32 %v1486, %v1386
        %1488 = vadd.xlane.f32.xlu0 %v1487
        %v1489 = vpop.xlane.xlu0 %1488
        %v1490 = vadd.f32 %v1387, %v1388
        %v1491 = vadd.f32 %v1490, %v1389
        %1492 = vadd.xlane.f32.xlu0 %v1491
        %v1493 = vpop.xlane.xlu0 %1492
        %v1494 = vadd.f32 %v1390, %v1391
        %v1495 = vadd.f32 %v1494, %v1392
        %1496 = vadd.xlane.f32.xlu0 %v1495
        %v1497 = vpop.xlane.xlu0 %1496
        %v1498 = vadd.f32 %v1393, %v1394
        %v1499 = vadd.f32 %v1498, %v1395
        %1500 = vadd.xlane.f32.xlu0 %v1499
        %v1501 = vpop.xlane.xlu0 %1500
        %v1502 = vadd.f32 %v1396, %v1397
        %v1503 = vadd.f32 %v1502, %v1398
        %1504 = vadd.xlane.f32.xlu0 %v1503
        %v1505 = vpop.xlane.xlu0 %1504
        %v1506 = vadd.f32 %v1399, %v1400
        %v1507 = vadd.f32 %v1506, %v1401
        %1508 = vadd.xlane.f32.xlu0 %v1507
        %v1509 = vpop.xlane.xlu0 %1508
        %v1510 = vadd.f32 %v1402, %v1403
        %v1511 = vadd.f32 %v1510, %v1404
        %1512 = vadd.xlane.f32.xlu0 %v1511
        %v1513 = vpop.xlane.xlu0 %1512
        %v1514 = vadd.f32 %v1405, %v1406
        %v1515 = vadd.f32 %v1514, %v1407
        %1516 = vadd.xlane.f32.xlu0 %v1515
        %v1517 = vpop.xlane.xlu0 %1516
        %v1518 = vadd.f32 %v1408, %v1409
        %v1519 = vadd.f32 %v1518, %v1410
        %1520 = vadd.xlane.f32.xlu0 %v1519
        %v1521 = vpop.xlane.xlu0 %1520
        %v1522 = vadd.f32 %v1411, %v1412
        %v1523 = vadd.f32 %v1522, %v1413
        %1524 = vadd.xlane.f32.xlu0 %v1523
        %v1525 = vpop.xlane.xlu0 %1524
        %v1526 = vadd.f32 %v1414, %v1415
        %v1527 = vadd.f32 %v1526, %v1416
        %1528 = vadd.xlane.f32.xlu0 %v1527
        %v1529 = vpop.xlane.xlu0 %1528
        %v1530 = vadd.f32 %v1417, %v1418
        %v1531 = vadd.f32 %v1530, %v1419
        %1532 = vadd.xlane.f32.xlu0 %v1531
        %v1533 = vpop.xlane.xlu0 %1532
        %v1534 = vadd.f32 %v1420, %v1421
        %v1535 = vadd.f32 %v1534, %v1422
        %1536 = vadd.xlane.f32.xlu0 %v1535
        %v1537 = vpop.xlane.xlu0 %1536
        %v1538 = vadd.f32 %v1423, %v1424
        %v1539 = vadd.f32 %v1538, %v1425
        %1540 = vadd.xlane.f32.xlu0 %v1539
        %v1541 = vpop.xlane.xlu0 %1540
        %v1542 = vadd.f32 %v1426, %v1427
        %v1543 = vadd.f32 %v1542, %v1428
        %1544 = vadd.xlane.f32.xlu0 %v1543
        %v1545 = vpop.xlane.xlu0 %1544
        %v1546 = vadd.f32 %v1429, %v1430
        %v1547 = vadd.f32 %v1546, %v1431
        %1548 = vadd.xlane.f32.xlu0 %v1547
        %v1549 = vpop.xlane.xlu0 %1548
        %v1550 = vadd.f32 %v1432, %v1433
        %v1551 = vadd.f32 %v1550, %v1434
        %1552 = vadd.xlane.f32.xlu0 %v1551
        %v1553 = vpop.xlane.xlu0 %1552
        %v1554 = vadd.f32 %v1435, %v1436
        %v1555 = vadd.f32 %v1554, %v1437
        %1556 = vadd.xlane.f32.xlu0 %v1555
        %v1557 = vpop.xlane.xlu0 %1556
        %v1558 = vadd.f32 %v1438, %v1439
        %v1559 = vadd.f32 %v1558, %v1440
        %1560 = vadd.xlane.f32.xlu0 %v1559
        %v1561 = vpop.xlane.xlu0 %1560
        %v1562 = vadd.f32 %v1441, %v1442
        %v1563 = vadd.f32 %v1562, %v1443
        %1564 = vadd.xlane.f32.xlu0 %v1563
        %v1565 = vpop.xlane.xlu0 %1564
        %v1566 = vadd.f32 %v1444, %v1445
        %v1567 = vadd.f32 %v1566, %v1446
        %1568 = vadd.xlane.f32.xlu0 %v1567
        %v1569 = vpop.xlane.xlu0 %1568
        %v1570 = vadd.f32 %v1447, %v1448
        %v1571 = vadd.f32 %v1570, %v1449
        %1572 = vadd.xlane.f32.xlu0 %v1571
        %v1573 = vpop.xlane.xlu0 %1572
        %v1574 = vadd.f32 %v1450, %v1451
        %v1575 = vadd.f32 %v1574, %v1452
        %1576 = vadd.xlane.f32.xlu0 %v1575
        %v1577 = vpop.xlane.xlu0 %1576
        %v1578 = vadd.f32 %v1453, %v1454
        %v1579 = vadd.f32 %v1578, %v1455
        %1580 = vadd.xlane.f32.xlu0 %v1579
        %v1581 = vpop.xlane.xlu0 %1580
        %v1582 = vadd.f32 %v1456, %v1457
        %v1583 = vadd.f32 %v1582, %v1458
        %1584 = vadd.xlane.f32.xlu0 %v1583
        %v1585 = vpop.xlane.xlu0 %1584
        %v1586 = vadd.f32 %v1459, %v1460
        %v1587 = vadd.f32 %v1586, %v1461
        %1588 = vadd.xlane.f32.xlu0 %v1587
        %v1589 = vpop.xlane.xlu0 %1588
        %vm1590 = vcmp.eq.s32.totalorder %v1267, 0
        %v1591 = vsel %vm1590, %v1465, 0.0
        %v1592 = vsel %vm1590, %v1469, 0.0
        %v1593 = vsel %vm1590, %v1473, 0.0
        %v1594 = vsel %vm1590, %v1477, 0.0
        %v1595 = vsel %vm1590, %v1481, 0.0
        %v1596 = vsel %vm1590, %v1485, 0.0
        %v1597 = vsel %vm1590, %v1489, 0.0
        %v1598 = vsel %vm1590, %v1493, 0.0
        %v1599 = vsel %vm1590, %v1497, 0.0
        %v1600 = vsel %vm1590, %v1501, 0.0
        %v1601 = vsel %vm1590, %v1505, 0.0
        %v1602 = vsel %vm1590, %v1509, 0.0
        %v1603 = vsel %vm1590, %v1513, 0.0
        %v1604 = vsel %vm1590, %v1517, 0.0
        %v1605 = vsel %vm1590, %v1521, 0.0
        %v1606 = vsel %vm1590, %v1525, 0.0
        %v1607 = vsel %vm1590, %v1529, 0.0
        %v1608 = vsel %vm1590, %v1533, 0.0
        %v1609 = vsel %vm1590, %v1537, 0.0
        %v1610 = vsel %vm1590, %v1541, 0.0
        %v1611 = vsel %vm1590, %v1545, 0.0
        %v1612 = vsel %vm1590, %v1549, 0.0
        %v1613 = vsel %vm1590, %v1553, 0.0
        %v1614 = vsel %vm1590, %v1557, 0.0
        %v1615 = vsel %vm1590, %v1561, 0.0
        %v1616 = vsel %vm1590, %v1565, 0.0
        %v1617 = vsel %vm1590, %v1569, 0.0
        %v1618 = vsel %vm1590, %v1573, 0.0
        %v1619 = vsel %vm1590, %v1577, 0.0
        %v1620 = vsel %vm1590, %v1581, 0.0
        %v1621 = vsel %vm1590, %v1585, 0.0
        %v1622 = vsel %vm1590, %v1589, 0.0
        %1623 = vst [vmem:[%s222] sm:$0xff] %v1591
        %1624 = vst [vmem:[%s222 + $0x8] sm:$0xff] %v1592
        %1625 = vst [vmem:[%s222 + $0x10] sm:$0xff] %v1593
        %1626 = vst [vmem:[%s222 + $0x18] sm:$0xff] %v1594
        %1627 = vst [vmem:[%s222 + $0x20] sm:$0xff] %v1595
        %1628 = vst [vmem:[%s222 + $0x28] sm:$0xff] %v1596
        %1629 = vst [vmem:[%s222 + $0x30] sm:$0xff] %v1597
        %1630 = vst [vmem:[%s222 + $0x38] sm:$0xff] %v1598
        %1631 = vst [vmem:[%s222 + $0x40] sm:$0xff] %v1599
        %1632 = vst [vmem:[%s222 + $0x48] sm:$0xff] %v1600
        %1633 = vst [vmem:[%s222 + $0x50] sm:$0xff] %v1601
        %1634 = vst [vmem:[%s222 + $0x58] sm:$0xff] %v1602
        %1635 = vst [vmem:[%s222 + $0x60] sm:$0xff] %v1603
        %1636 = vst [vmem:[%s222 + $0x68] sm:$0xff] %v1604
        %1637 = vst [vmem:[%s222 + $0x70] sm:$0xff] %v1605
        %1638 = vst [vmem:[%s222 + $0x78] sm:$0xff] %v1606
        %1639 = vst [vmem:[%s222 + $0x80] sm:$0xff] %v1607
        %1640 = vst [vmem:[%s222 + $0x88] sm:$0xff] %v1608
        %1641 = vst [vmem:[%s222 + $0x90] sm:$0xff] %v1609
        %1642 = vst [vmem:[%s222 + $0x98] sm:$0xff] %v1610
        %1643 = vst [vmem:[%s222 + $0xa0] sm:$0xff] %v1611
        %1644 = vst [vmem:[%s222 + $0xa8] sm:$0xff] %v1612
        %1645 = vst [vmem:[%s222 + $0xb0] sm:$0xff] %v1613
        %1646 = vst [vmem:[%s222 + $0xb8] sm:$0xff] %v1614
        %1647 = vst [vmem:[%s222 + $0xc0] sm:$0xff] %v1615
        %1648 = vst [vmem:[%s222 + $0xc8] sm:$0xff] %v1616
        %1649 = vst [vmem:[%s222 + $0xd0] sm:$0xff] %v1617
        %1650 = vst [vmem:[%s222 + $0xd8] sm:$0xff] %v1618
        %1651 = vst [vmem:[%s222 + $0xe0] sm:$0xff] %v1619
        %1652 = vst [vmem:[%s222 + $0xe8] sm:$0xff] %v1620
        %1653 = vst [vmem:[%s222 + $0xf0] sm:$0xff] %v1621
        %1654 = vst [vmem:[%s222 + $0xf8] sm:$0xff] %v1622
        %s1655 = sand.u32 %s121, 1
        %s1656 = scalar_lea.sflag [#allocation4], %s1655
        %s1657 = sand.u32 %s121, 1
        %s1658 = smul.addr %s1657, 256
        %s1659 = scalar_lea.vmem [#allocation5], %s1658
        // Predicated region
        $region41: #{tpu_custom_call.1} parent=35 // pred_check
          %p1660 = pneg %p131
        $region42: #{tpu_custom_call.1} parent=35 // pred_check_branch
          %1662 = sbr.rel (%p1660) target = $region44
        $region43: #{tpu_custom_call.1} parent=35 // pred_region
          %s1663 = smul.u32 32, %s19
          %s1665 = ssub.s32 4096, 4096
          %1666 = vsyncadd %s1656, %s1665
          %s1667 = smul.addr %s1663, 128
          %s1668 = scalar_lea.hbm %s4, %s1667
          %s1669 = sshll.u32 %s1659, 4
          %s1670 = int_to_ptr.vmem [resolvable:$true] %s1669
          %1675 = dma.vmem_to_hbm [thread:$0]  %s1670, 4096, %s1668, %s1656, 128, 128, 8
        $region44: #{tpu_custom_call.1} parent=35 // pred_fallthru
          _
      $region36: #{tpu_custom_call.1} parent=5 // pred_fallthru
        _
      %p1676 = scmp.le.s32.totalorder 2, %s14
      // Predicated region
      $region45: #{tpu_custom_call.1} parent=5 // pred_check
        %p1677 = pneg %p1676
      $region46: #{tpu_custom_call.1} parent=5 // pred_check_branch
        %1679 = sbr.rel (%p1677) target = $region48
      $region47: #{tpu_custom_call.1} parent=5 // pred_region
        %s1680 = ssub.s32 %s14, 2
        // Predicated region
        $region49: #{tpu_custom_call.1} parent=47 // pred_check
          %p1681 = pneg %p137
        $region50: #{tpu_custom_call.1} parent=47 // pred_check_branch
          %1683 = sbr.rel (%p1681) target = $region52
        $region51: #{tpu_custom_call.1} parent=47 // pred_region
          %s1684 = sand.u32 %s122, 1
          %s1685 = scalar_lea.sflag [#allocation4], %s1684
          %s1686 = sand.u32 %s122, 1
          %s1687 = smul.addr %s1686, 256
          %s1688 = scalar_lea.vmem [#allocation5], %s1687
          %1689 = dma.done %s1685, 4096
        $region52: #{tpu_custom_call.1} parent=47 // pred_fallthru
          _
      $region48: #{tpu_custom_call.1} parent=5 // pred_fallthru
        _
    $region6: #{tpu_custom_call.1} parent=1 // loop_footer
      %s18 = sadd.s32 1, %s14
    $region7: #{tpu_custom_call.1} parent=1 // loop_footer_branch
      %13 = sbr.rel target = $region3
    $region8: #{tpu_custom_call.1} parent=1 // loop_exit
      _
    %1690 = vsyncpa [#allocation3], 1
    %s1691 = scalar_lea.sflag [#allocation3], 1
    %1692 = vsyncpa %s1691, 1
    %1693 = vsyncpa [#allocation4], 1
    %s1694 = scalar_lea.sflag [#allocation4], 1
    %1695 = vsyncpa %s1694, 1

</llo_original>
